<compile_context>
chip_gen: v5e
topology: v5e:2x2
jax: 0.10.0
libtpu: 0.0.40
codegen_flags: <defaults>
</compile_context>

<pallas_src>
import functools

import jax
import jax.numpy as jnp
from jax import lax
from jax.experimental import pallas as pl
from jax.experimental.pallas import tpu as pltpu


def _roll_lanes_hw(v, shift):
    # Mosaic-native lane rotation (XLU slot); shift is a static non-negative int.
    return pltpu.roll(v, shift, axis=1)


def _roll_lanes_jnp(v, shift):
    # Pure-jnp fallback (slice + concat); identical math, used only if the
    # running jax build has no interpret-mode impl for pltpu.roll.
    return jnp.roll(v, shift, axis=1)


def _sigmoid(z):
    return 1.0 / (1.0 + jnp.exp(-z))


def self_conv_kernel(x_ref, w1_ref, b1_ref, w2_ref, b2_ref, o_ref, *, W, B, C, roll_fn):
    # x_ref:  (B*C, HW)        B images, channels on sublanes, H*W on lanes
    # w1_ref: (B*MID, 3*B*C)   conv1: per-image block-diag, tap-major columns
    # b1_ref: (B*MID, 1)
    # w2_ref: (3*B, B*MID)     conv2: tap-major rows, per-image block-diag
    # b2_ref: (1,)  in SMEM
    # o_ref:  (B*C, HW)
    x = x_ref[...]
    HW = x.shape[1]

    # H-boundary masks built once at (1, HW): lane p encodes (h, w) = (p//W, p%W),
    # so h == 0  <=>  p < W   and   h == H-1  <=>  p >= HW - W.
    lane = lax.broadcasted_iota(jnp.int32, (1, HW), 1)
    m_first = lane < W
    m_last = lane >= HW - W

    # [3,1] conv with pad [1,0]: the +-1 shifts along H are lane rolls by +-W,
    # with the wrapped boundary lanes zeroed (== the conv's zero padding).
    x_m1 = jnp.where(m_first, 0.0, roll_fn(x, W))        # x[..., h-1, :]
    x_p1 = jnp.where(m_last, 0.0, roll_fn(x, HW - W))    # x[..., h+1, :]

    # ---- conv1: all 3 taps of all B images in ONE matmul ----
    xcat = jnp.concatenate([x_m1, x, x_p1], axis=0)      # (3*B*C, HW), tap-major
    z1 = jnp.dot(w1_ref[...], xcat,
                 preferred_element_type=jnp.float32) + b1_ref[...]
    h1 = _sigmoid(z1)                                    # (B*MID, HW)

    # ---- conv2: one matmul for all taps/images, then shift-combine its rows ----
    u = jnp.dot(w2_ref[...], h1, preferred_element_type=jnp.float32)   # (3*B, HW)
    z2 = (jnp.where(m_first, 0.0, roll_fn(u[0:B], W))
          + u[B:2 * B]
          + jnp.where(m_last, 0.0, roll_fn(u[2 * B:3 * B], HW - W))
          + b2_ref[0])                                   # (B, HW)
    gate = _sigmoid(z2)

    # ---- out = x * gate, gate row broadcast over that image's C channels ----
    for n in range(B):
        o_ref[n * C:(n + 1) * C, :] = x[n * C:(n + 1) * C, :] * gate[n:n + 1, :]


def self_conv_forward(x, w1, b1, w2, b2, *, use_hw_roll=True):
    """x: (N, C, H, W) float32, NCHW like PyTorch.  Returns (N, C, H, W)."""
    N, C, H, W = x.shape
    HW = H * W
    mid = w1.shape[0]                                   # conv1 output channels (32)

    # Pack B images per block so B*C fills the 8 f32 sublanes; grid = N // B steps.
    B = min(N, max(1, 8 // max(C, 1)))
    while N % B:
        B -= 1
    G = N // B
    if G > 1 and (B * C) % 8 != 0:
        B, G = N, 1                                     # keep the block sublane-legal

    # Free reshape of contiguous NCHW -> (N*C, H*W): no transposes, no HBM round-trips.
    x_view = x.reshape(N * C, HW)

    # PyTorch Conv2d weight is (O, I, kH, kW) with kW == 1.
    w1k = jnp.transpose(w1[:, :, :, 0], (2, 0, 1))      # (3, MID, C)  per-tap matmuls
    w2k = jnp.transpose(w2[0, :, :, 0], (1, 0))         # (3, MID)     per-tap rows
    eye_b = jnp.eye(B, dtype=x.dtype)
    # Per-image block-diagonal weights -> one matmul per conv for the whole block.
    # conv1: columns tap-major to match xcat = [x_m1; x; x_p1].
    w1big = jnp.concatenate([jnp.kron(eye_b, w1k[t]) for t in range(3)], axis=1)        # (B*MID, 3*B*C)
    # conv2: rows tap-major so u[0:B] / u[B:2B] / u[2B:3B] are taps 0/1/2 per image.
    w2big = jnp.concatenate([jnp.kron(eye_b, w2k[t:t + 1]) for t in range(3)], axis=0)  # (3*B, B*MID)
    b1big = jnp.tile(b1.reshape(mid, 1), (B, 1))        # (B*MID, 1)
    b2s = b2.reshape(1)                                 # scalar -> SMEM

    roll_fn = _roll_lanes_hw if use_hw_roll else _roll_lanes_jnp
    kernel = functools.partial(self_conv_kernel, W=W, B=B, C=C, roll_fn=roll_fn)

    out = pl.pallas_call(
        kernel,
        out_shape=jax.ShapeDtypeStruct((N * C, HW), x.dtype),
        grid_spec=pltpu.PrefetchScalarGridSpec(
            num_scalar_prefetch=0,
            grid=(G,),
            in_specs=[
                pl.BlockSpec((B * C, HW), lambda i: (i, 0)),            # B images
                pl.BlockSpec((B * mid, 3 * B * C), lambda i: (0, 0)),   # conv1 weights
                pl.BlockSpec((B * mid, 1), lambda i: (0, 0)),           # conv1 bias
                pl.BlockSpec((3 * B, B * mid), lambda i: (0, 0)),       # conv2 weights
                pl.BlockSpec(memory_space=pltpu.MemorySpace.SMEM),      # conv2 bias (scalar)
            ],
            out_specs=pl.BlockSpec((B * C, HW), lambda i: (i, 0)),
        ),
        compiler_params=pltpu.CompilerParams(
            dimension_semantics=("parallel",)),
    )(x_view, w1big, b1big, w2big, b2s)

    return out.reshape(N, C, H, W)


def init_params(out_ch, key):
    """Deterministic synthetic params matching Self_Conv.__init__ shapes.
    Weights: xavier_normal_ (as in _init_weight); biases: PyTorch default uniform."""
    k1, k2, k3, k4 = jax.random.split(key, 4)
    fan_in1, fan_out1 = out_ch * 3 * 1, 32 * 3 * 1
    std1 = (2.0 / (fan_in1 + fan_out1)) ** 0.5
    w1 = jax.random.normal(k1, (32, out_ch, 3, 1), jnp.float32) * std1
    fan_in2, fan_out2 = 32 * 3 * 1, 1 * 3 * 1
    std2 = (2.0 / (fan_in2 + fan_out2)) ** 0.5
    w2 = jax.random.normal(k2, (1, 32, 3, 1), jnp.float32) * std2
    bb1 = 1.0 / (fan_in1 ** 0.5)
    bb2 = 1.0 / (fan_in2 ** 0.5)
    b1 = jax.random.uniform(k3, (32,), jnp.float32, -bb1, bb1)
    b2 = jax.random.uniform(k4, (1,), jnp.float32, -bb2, bb2)
    return w1, b1, w2, b2


def ref_forward(x, w1, b1, w2, b2):
    """Plain-JAX reference (lax convs) replicating the PyTorch forward."""
    dn1 = lax.conv_dimension_numbers(x.shape, w1.shape, ('NCHW', 'OIHW', 'NCHW'))
    y = lax.conv_general_dilated(x, w1, (1, 1), ((1, 1), (0, 0)),
                                 dimension_numbers=dn1) + b1[None, :, None, None]
    y = jax.nn.sigmoid(y)
    dn2 = lax.conv_dimension_numbers(y.shape, w2.shape, ('NCHW', 'OIHW', 'NCHW'))
    y = lax.conv_general_dilated(y, w2, (1, 1), ((1, 1), (0, 0)),
                                 dimension_numbers=dn2) + b2[None, :, None, None]
    y = jax.nn.sigmoid(y)
    return x * y


if __name__ == "__main__":
    key = jax.random.PRNGKey(0)
    kx, kp = jax.random.split(key)

    N, out_ch, H, W = 2, 4, 16, 16
    x = jax.random.normal(kx, (N, out_ch, H, W), jnp.float32)
    w1, b1, w2, b2 = init_params(out_ch, kp)

    try:
        out = jax.block_until_ready(self_conv_forward(x, w1, b1, w2, b2))
    except Exception:
        # Some jax builds lack an interpret-mode impl for pltpu.roll; rerun with the
        # mathematically identical jnp.roll path (only the shift lowering differs).
        out = jax.block_until_ready(
            self_conv_forward(x, w1, b1, w2, b2, use_hw_roll=False))

    ref = ref_forward(x, w1, b1, w2, b2)
    assert out.shape == x.shape and out.dtype == jnp.float32
    assert jnp.allclose(out, ref, atol=1e-5, rtol=1e-5), "mismatch vs reference"

    print("KERNEL_OK")
</pallas_src>

<mosaic_0001>
module attributes {stable_mosaic.version = 11 : i64} {
  func.func @self_conv_kernel(%arg0: i32, %arg1: memref<8x256xf32, #tpu.memory_space<vmem>>, %arg2: memref<64x24xf32, #tpu.memory_space<vmem>>, %arg3: memref<64x1xf32, #tpu.memory_space<vmem>>, %arg4: memref<6x64xf32, #tpu.memory_space<vmem>>, %arg5: memref<1xf32, #tpu.memory_space<smem>>, %arg6: memref<8x256xf32, #tpu.memory_space<vmem>>) attributes {dimension_semantics = [#tpu.dimension_semantics<parallel>], iteration_bounds = array<i64: 1>, scalar_prefetch = 0 : i64, scratch_operands = 0 : i64, tpu.core_type = #tpu.core_type<tc>, window_params = [{transform_indices = @transform_0, window_bounds = array<i64: 8, 256>}, {pipeline_mode = #tpu.pipeline_mode<synchronous>, transform_indices = @transform_1, window_bounds = array<i64: 64, 24>}, {pipeline_mode = #tpu.pipeline_mode<synchronous>, transform_indices = @transform_2, window_bounds = array<i64: 64, 1>}, {pipeline_mode = #tpu.pipeline_mode<synchronous>, transform_indices = @transform_3, window_bounds = array<i64: 6, 64>}, {transform_indices = @transform_4, window_bounds = array<i64: 1>}, {transform_indices = @transform_5, window_bounds = array<i64: 8, 256>}]} {
    %c0 = arith.constant 0 : index
    %c0_0 = arith.constant 0 : index
    %0 = vector.load %arg1[%c0, %c0_0] : memref<8x256xf32, #tpu.memory_space<vmem>>, vector<8x256xf32>
    %1 = tpu.iota {dimensions = array<i32: 1>} : vector<1x256xi32>
    %c16_i32 = arith.constant 16 : i32
    %2 = vector.broadcast %c16_i32 : i32 to vector<1x256xi32>
    %3 = arith.cmpi slt, %1, %2 : vector<1x256xi32>
    %c240_i32 = arith.constant 240 : i32
    %4 = vector.broadcast %c240_i32 : i32 to vector<1x256xi32>
    %5 = arith.cmpi sge, %1, %4 : vector<1x256xi32>
    %c16_i32_1 = arith.constant 16 : i32
    %6 = tpu.dynamic_rotate %0 by %c16_i32_1 dim 1 : vector<8x256xf32>, i32 -> vector<8x256xf32>
    %cst = arith.constant 0.000000e+00 : f32
    %7 = vector.shape_cast %3 : vector<1x256xi1> to vector<1x256xi1>
    %8 = vector.broadcast %7 : vector<1x256xi1> to vector<8x256xi1>
    %9 = vector.broadcast %cst : f32 to vector<8x256xf32>
    %10 = arith.select %8, %9, %6 : vector<8x256xi1>, vector<8x256xf32>
    %c240_i32_2 = arith.constant 240 : i32
    %11 = tpu.dynamic_rotate %0 by %c240_i32_2 dim 1 : vector<8x256xf32>, i32 -> vector<8x256xf32>
    %cst_3 = arith.constant 0.000000e+00 : f32
    %12 = vector.shape_cast %5 : vector<1x256xi1> to vector<1x256xi1>
    %13 = vector.broadcast %12 : vector<1x256xi1> to vector<8x256xi1>
    %14 = vector.broadcast %cst_3 : f32 to vector<8x256xf32>
    %15 = arith.select %13, %14, %11 : vector<8x256xi1>, vector<8x256xf32>
    %16 = tpu.concatenate %10, %0, %15 in 0 : vector<8x256xf32>, vector<8x256xf32>, vector<8x256xf32> -> vector<24x256xf32>
    %c0_4 = arith.constant 0 : index
    %c0_5 = arith.constant 0 : index
    %17 = vector.load %arg2[%c0_4, %c0_5] : memref<64x24xf32, #tpu.memory_space<vmem>>, vector<64x24xf32>
    %cst_6 = arith.constant dense<0.000000e+00> : vector<64x256xf32>
    %18 = tpu.matmul %17, %16, %cst_6 {dimension_numbers = #tpu.dot_dimension_numbers<[1], [0], [0], [1], [0, 0, 1, 1], [], []>} : vector<64x24xf32>, vector<24x256xf32>, vector<64x256xf32> -> vector<64x256xf32>
    %c0_7 = arith.constant 0 : index
    %c0_8 = arith.constant 0 : index
    %19 = vector.load %arg3[%c0_7, %c0_8] : memref<64x1xf32, #tpu.memory_space<vmem>>, vector<64x1xf32>
    %20 = vector.broadcast %19 : vector<64x1xf32> to vector<64x256xf32>
    %21 = arith.addf %18, %20 : vector<64x256xf32>
    %cst_9 = arith.constant 0.000000e+00 : f32
    %22 = vector.broadcast %cst_9 : f32 to vector<64x256xf32>
    %23 = arith.subf %22, %21 : vector<64x256xf32>
    %24 = math.exp %23 : vector<64x256xf32>
    %cst_10 = arith.constant 1.000000e+00 : f32
    %25 = vector.broadcast %cst_10 : f32 to vector<64x256xf32>
    %26 = arith.addf %25, %24 : vector<64x256xf32>
    %cst_11 = arith.constant 1.000000e+00 : f32
    %27 = vector.broadcast %cst_11 : f32 to vector<64x256xf32>
    %28 = arith.divf %27, %26 : vector<64x256xf32>
    %c0_12 = arith.constant 0 : index
    %c0_13 = arith.constant 0 : index
    %29 = vector.load %arg4[%c0_12, %c0_13] : memref<6x64xf32, #tpu.memory_space<vmem>>, vector<6x64xf32>
    %cst_14 = arith.constant dense<0.000000e+00> : vector<6x256xf32>
    %30 = tpu.matmul %29, %28, %cst_14 {dimension_numbers = #tpu.dot_dimension_numbers<[1], [0], [0], [1], [0, 0, 1, 1], [], []>} : vector<6x64xf32>, vector<64x256xf32>, vector<6x256xf32> -> vector<6x256xf32>
    %31 = vector.extract_strided_slice %30 {offsets = [0, 0], sizes = [2, 256], strides = [1, 1]} : vector<6x256xf32> to vector<2x256xf32>
    %c16_i32_15 = arith.constant 16 : i32
    %32 = tpu.dynamic_rotate %31 by %c16_i32_15 dim 1 : vector<2x256xf32>, i32 -> vector<2x256xf32>
    %cst_16 = arith.constant 0.000000e+00 : f32
    %33 = vector.shape_cast %3 : vector<1x256xi1> to vector<1x256xi1>
    %34 = vector.broadcast %33 : vector<1x256xi1> to vector<2x256xi1>
    %35 = vector.broadcast %cst_16 : f32 to vector<2x256xf32>
    %36 = arith.select %34, %35, %32 : vector<2x256xi1>, vector<2x256xf32>
    %37 = vector.extract_strided_slice %30 {offsets = [2, 0], sizes = [2, 256], strides = [1, 1]} : vector<6x256xf32> to vector<2x256xf32>
    %38 = arith.addf %36, %37 : vector<2x256xf32>
    %39 = vector.extract_strided_slice %30 {offsets = [4, 0], sizes = [2, 256], strides = [1, 1]} : vector<6x256xf32> to vector<2x256xf32>
    %c240_i32_17 = arith.constant 240 : i32
    %40 = tpu.dynamic_rotate %39 by %c240_i32_17 dim 1 : vector<2x256xf32>, i32 -> vector<2x256xf32>
    %cst_18 = arith.constant 0.000000e+00 : f32
    %41 = vector.shape_cast %5 : vector<1x256xi1> to vector<1x256xi1>
    %42 = vector.broadcast %41 : vector<1x256xi1> to vector<2x256xi1>
    %43 = vector.broadcast %cst_18 : f32 to vector<2x256xf32>
    %44 = arith.select %42, %43, %40 : vector<2x256xi1>, vector<2x256xf32>
    %45 = arith.addf %38, %44 : vector<2x256xf32>
    %c0_19 = arith.constant 0 : index
    %46 = memref.load %arg5[%c0_19] : memref<1xf32, #tpu.memory_space<smem>>
    %47 = vector.broadcast %46 : f32 to vector<2x256xf32>
    %48 = arith.addf %45, %47 : vector<2x256xf32>
    %cst_20 = arith.constant 0.000000e+00 : f32
    %49 = vector.broadcast %cst_20 : f32 to vector<2x256xf32>
    %50 = arith.subf %49, %48 : vector<2x256xf32>
    %51 = math.exp %50 : vector<2x256xf32>
    %cst_21 = arith.constant 1.000000e+00 : f32
    %52 = vector.broadcast %cst_21 : f32 to vector<2x256xf32>
    %53 = arith.addf %52, %51 : vector<2x256xf32>
    %cst_22 = arith.constant 1.000000e+00 : f32
    %54 = vector.broadcast %cst_22 : f32 to vector<2x256xf32>
    %55 = arith.divf %54, %53 : vector<2x256xf32>
    %56 = vector.extract_strided_slice %0 {offsets = [0, 0], sizes = [4, 256], strides = [1, 1]} : vector<8x256xf32> to vector<4x256xf32>
    %57 = vector.extract_strided_slice %55 {offsets = [0, 0], sizes = [1, 256], strides = [1, 1]} : vector<2x256xf32> to vector<1x256xf32>
    %58 = vector.broadcast %57 : vector<1x256xf32> to vector<4x256xf32>
    %59 = arith.mulf %56, %58 : vector<4x256xf32>
    %c0_23 = arith.constant 0 : index
    %c0_24 = arith.constant 0 : index
    %60 = vector.load %arg6[%c0_23, %c0_24] : memref<8x256xf32, #tpu.memory_space<vmem>>, vector<4x256xf32>
    tpu.vector_store %arg6[%c0_23, %c0_24], %59 {strides = array<i32>} : memref<8x256xf32, #tpu.memory_space<vmem>>, vector<4x256xf32>,
    %61 = vector.extract_strided_slice %0 {offsets = [4, 0], sizes = [4, 256], strides = [1, 1]} : vector<8x256xf32> to vector<4x256xf32>
    %62 = vector.extract_strided_slice %55 {offsets = [1, 0], sizes = [1, 256], strides = [1, 1]} : vector<2x256xf32> to vector<1x256xf32>
    %63 = vector.broadcast %62 : vector<1x256xf32> to vector<4x256xf32>
    %64 = arith.mulf %61, %63 : vector<4x256xf32>
    %c4 = arith.constant 4 : index
    %c0_25 = arith.constant 0 : index
    %65 = vector.load %arg6[%c4, %c0_25] : memref<8x256xf32, #tpu.memory_space<vmem>>, vector<4x256xf32>
    tpu.vector_store %arg6[%c4, %c0_25], %64 {strides = array<i32>} : memref<8x256xf32, #tpu.memory_space<vmem>>, vector<4x256xf32>,
    return
  }
  func.func @transform_0(%arg0: i32) -> (i32, i32) {
    %c0_i32 = arith.constant 0 : i32
    %c0_i32_0 = arith.constant 0 : i32
    return %arg0, %c0_i32 : i32, i32
  }
  func.func @transform_1(%arg0: i32) -> (i32, i32) {
    %c0_i32 = arith.constant 0 : i32
    %c0_i32_0 = arith.constant 0 : i32
    %c0_i32_1 = arith.constant 0 : i32
    return %c0_i32, %c0_i32_0 : i32, i32
  }
  func.func @transform_2(%arg0: i32) -> (i32, i32) {
    %c0_i32 = arith.constant 0 : i32
    %c0_i32_0 = arith.constant 0 : i32
    %c0_i32_1 = arith.constant 0 : i32
    return %c0_i32, %c0_i32_0 : i32, i32
  }
  func.func @transform_3(%arg0: i32) -> (i32, i32) {
    %c0_i32 = arith.constant 0 : i32
    %c0_i32_0 = arith.constant 0 : i32
    %c0_i32_1 = arith.constant 0 : i32
    return %c0_i32, %c0_i32_0 : i32, i32
  }
  func.func @transform_4(%arg0: i32) -> i32 {
    %c0_i32 = arith.constant 0 : i32
    %c0_i32_0 = arith.constant 0 : i32
    return %c0_i32 : i32
  }
  func.func @transform_5(%arg0: i32) -> (i32, i32) {
    %c0_i32 = arith.constant 0 : i32
    %c0_i32_0 = arith.constant 0 : i32
    return %arg0, %c0_i32 : i32, i32
  }
}

module attributes {stable_mosaic.version = 11 : i64} {
  func.func @self_conv_kernel(%arg0: i32, %arg1: memref<8x256xf32, #tpu.memory_space<vmem>>, %arg2: memref<64x24xf32, #tpu.memory_space<vmem>>, %arg3: memref<64x1xf32, #tpu.memory_space<vmem>>, %arg4: memref<6x64xf32, #tpu.memory_space<vmem>>, %arg5: memref<1xf32, #tpu.memory_space<smem>>, %arg6: memref<8x256xf32, #tpu.memory_space<vmem>>) attributes {dimension_semantics = [#tpu.dimension_semantics<parallel>], iteration_bounds = array<i64: 1>, scalar_prefetch = 0 : i64, scratch_operands = 0 : i64, tpu.core_type = #tpu.core_type<tc>, window_params = [{transform_indices = @transform_0, window_bounds = array<i64: 8, 256>}, {pipeline_mode = #tpu.pipeline_mode<synchronous>, transform_indices = @transform_1, window_bounds = array<i64: 64, 24>}, {pipeline_mode = #tpu.pipeline_mode<synchronous>, transform_indices = @transform_2, window_bounds = array<i64: 64, 1>}, {pipeline_mode = #tpu.pipeline_mode<synchronous>, transform_indices = @transform_3, window_bounds = array<i64: 6, 64>}, {transform_indices = @transform_4, window_bounds = array<i64: 1>}, {transform_indices = @transform_5, window_bounds = array<i64: 8, 256>}]} {
    %c0 = arith.constant 0 : index
    %c0_0 = arith.constant 0 : index
    %0 = vector.load %arg1[%c0, %c0_0] : memref<8x256xf32, #tpu.memory_space<vmem>>, vector<8x256xf32>
    %1 = tpu.iota {dimensions = array<i32: 1>} : vector<1x256xi32>
    %c16_i32 = arith.constant 16 : i32
    %2 = vector.broadcast %c16_i32 : i32 to vector<1x256xi32>
    %3 = arith.cmpi slt, %1, %2 : vector<1x256xi32>
    %c240_i32 = arith.constant 240 : i32
    %4 = vector.broadcast %c240_i32 : i32 to vector<1x256xi32>
    %5 = arith.cmpi sge, %1, %4 : vector<1x256xi32>
    %6 = vector.extract_strided_slice %0 {offsets = [0, 240], sizes = [8, 16], strides = [1, 1]} : vector<8x256xf32> to vector<8x16xf32>
    %7 = vector.extract_strided_slice %0 {offsets = [0, 0], sizes = [8, 240], strides = [1, 1]} : vector<8x256xf32> to vector<8x240xf32>
    %8 = tpu.concatenate %6, %7 in 1 : vector<8x16xf32>, vector<8x240xf32> -> vector<8x256xf32>
    %cst = arith.constant 0.000000e+00 : f32
    %9 = vector.shape_cast %3 : vector<1x256xi1> to vector<1x256xi1>
    %10 = vector.broadcast %9 : vector<1x256xi1> to vector<8x256xi1>
    %11 = vector.broadcast %cst : f32 to vector<8x256xf32>
    %12 = arith.select %10, %11, %8 : vector<8x256xi1>, vector<8x256xf32>
    %13 = vector.extract_strided_slice %0 {offsets = [0, 16], sizes = [8, 240], strides = [1, 1]} : vector<8x256xf32> to vector<8x240xf32>
    %14 = vector.extract_strided_slice %0 {offsets = [0, 0], sizes = [8, 16], strides = [1, 1]} : vector<8x256xf32> to vector<8x16xf32>
    %15 = tpu.concatenate %13, %14 in 1 : vector<8x240xf32>, vector<8x16xf32> -> vector<8x256xf32>
    %cst_1 = arith.constant 0.000000e+00 : f32
    %16 = vector.shape_cast %5 : vector<1x256xi1> to vector<1x256xi1>
    %17 = vector.broadcast %16 : vector<1x256xi1> to vector<8x256xi1>
    %18 = vector.broadcast %cst_1 : f32 to vector<8x256xf32>
    %19 = arith.select %17, %18, %15 : vector<8x256xi1>, vector<8x256xf32>
    %20 = tpu.concatenate %12, %0, %19 in 0 : vector<8x256xf32>, vector<8x256xf32>, vector<8x256xf32> -> vector<24x256xf32>
    %c0_2 = arith.constant 0 : index
    %c0_3 = arith.constant 0 : index
    %21 = vector.load %arg2[%c0_2, %c0_3] : memref<64x24xf32, #tpu.memory_space<vmem>>, vector<64x24xf32>
    %cst_4 = arith.constant dense<0.000000e+00> : vector<64x256xf32>
    %22 = tpu.matmul %21, %20, %cst_4 {dimension_numbers = #tpu.dot_dimension_numbers<[1], [0], [0], [1], [0, 0, 1, 1], [], []>} : vector<64x24xf32>, vector<24x256xf32>, vector<64x256xf32> -> vector<64x256xf32>
    %c0_5 = arith.constant 0 : index
    %c0_6 = arith.constant 0 : index
    %23 = vector.load %arg3[%c0_5, %c0_6] : memref<64x1xf32, #tpu.memory_space<vmem>>, vector<64x1xf32>
    %24 = vector.broadcast %23 : vector<64x1xf32> to vector<64x256xf32>
    %25 = arith.addf %22, %24 : vector<64x256xf32>
    %cst_7 = arith.constant 0.000000e+00 : f32
    %26 = vector.broadcast %cst_7 : f32 to vector<64x256xf32>
    %27 = arith.subf %26, %25 : vector<64x256xf32>
    %28 = math.exp %27 : vector<64x256xf32>
    %cst_8 = arith.constant 1.000000e+00 : f32
    %29 = vector.broadcast %cst_8 : f32 to vector<64x256xf32>
    %30 = arith.addf %29, %28 : vector<64x256xf32>
    %cst_9 = arith.constant 1.000000e+00 : f32
    %31 = vector.broadcast %cst_9 : f32 to vector<64x256xf32>
    %32 = arith.divf %31, %30 : vector<64x256xf32>
    %c0_10 = arith.constant 0 : index
    %c0_11 = arith.constant 0 : index
    %33 = vector.load %arg4[%c0_10, %c0_11] : memref<6x64xf32, #tpu.memory_space<vmem>>, vector<6x64xf32>
    %cst_12 = arith.constant dense<0.000000e+00> : vector<6x256xf32>
    %34 = tpu.matmul %33, %32, %cst_12 {dimension_numbers = #tpu.dot_dimension_numbers<[1], [0], [0], [1], [0, 0, 1, 1], [], []>} : vector<6x64xf32>, vector<64x256xf32>, vector<6x256xf32> -> vector<6x256xf32>
    %35 = vector.extract_strided_slice %34 {offsets = [0, 0], sizes = [2, 256], strides = [1, 1]} : vector<6x256xf32> to vector<2x256xf32>
    %36 = vector.extract_strided_slice %35 {offsets = [0, 240], sizes = [2, 16], strides = [1, 1]} : vector<2x256xf32> to vector<2x16xf32>
    %37 = vector.extract_strided_slice %35 {offsets = [0, 0], sizes = [2, 240], strides = [1, 1]} : vector<2x256xf32> to vector<2x240xf32>
    %38 = tpu.concatenate %36, %37 in 1 : vector<2x16xf32>, vector<2x240xf32> -> vector<2x256xf32>
    %cst_13 = arith.constant 0.000000e+00 : f32
    %39 = vector.shape_cast %3 : vector<1x256xi1> to vector<1x256xi1>
    %40 = vector.broadcast %39 : vector<1x256xi1> to vector<2x256xi1>
    %41 = vector.broadcast %cst_13 : f32 to vector<2x256xf32>
    %42 = arith.select %40, %41, %38 : vector<2x256xi1>, vector<2x256xf32>
    %43 = vector.extract_strided_slice %34 {offsets = [2, 0], sizes = [2, 256], strides = [1, 1]} : vector<6x256xf32> to vector<2x256xf32>
    %44 = arith.addf %42, %43 : vector<2x256xf32>
    %45 = vector.extract_strided_slice %34 {offsets = [4, 0], sizes = [2, 256], strides = [1, 1]} : vector<6x256xf32> to vector<2x256xf32>
    %46 = vector.extract_strided_slice %45 {offsets = [0, 16], sizes = [2, 240], strides = [1, 1]} : vector<2x256xf32> to vector<2x240xf32>
    %47 = vector.extract_strided_slice %45 {offsets = [0, 0], sizes = [2, 16], strides = [1, 1]} : vector<2x256xf32> to vector<2x16xf32>
    %48 = tpu.concatenate %46, %47 in 1 : vector<2x240xf32>, vector<2x16xf32> -> vector<2x256xf32>
    %cst_14 = arith.constant 0.000000e+00 : f32
    %49 = vector.shape_cast %5 : vector<1x256xi1> to vector<1x256xi1>
    %50 = vector.broadcast %49 : vector<1x256xi1> to vector<2x256xi1>
    %51 = vector.broadcast %cst_14 : f32 to vector<2x256xf32>
    %52 = arith.select %50, %51, %48 : vector<2x256xi1>, vector<2x256xf32>
    %53 = arith.addf %44, %52 : vector<2x256xf32>
    %c0_15 = arith.constant 0 : index
    %54 = memref.load %arg5[%c0_15] : memref<1xf32, #tpu.memory_space<smem>>
    %55 = vector.broadcast %54 : f32 to vector<2x256xf32>
    %56 = arith.addf %53, %55 : vector<2x256xf32>
    %cst_16 = arith.constant 0.000000e+00 : f32
    %57 = vector.broadcast %cst_16 : f32 to vector<2x256xf32>
    %58 = arith.subf %57, %56 : vector<2x256xf32>
    %59 = math.exp %58 : vector<2x256xf32>
    %cst_17 = arith.constant 1.000000e+00 : f32
    %60 = vector.broadcast %cst_17 : f32 to vector<2x256xf32>
    %61 = arith.addf %60, %59 : vector<2x256xf32>
    %cst_18 = arith.constant 1.000000e+00 : f32
    %62 = vector.broadcast %cst_18 : f32 to vector<2x256xf32>
    %63 = arith.divf %62, %61 : vector<2x256xf32>
    %64 = vector.extract_strided_slice %0 {offsets = [0, 0], sizes = [4, 256], strides = [1, 1]} : vector<8x256xf32> to vector<4x256xf32>
    %65 = vector.extract_strided_slice %63 {offsets = [0, 0], sizes = [1, 256], strides = [1, 1]} : vector<2x256xf32> to vector<1x256xf32>
    %66 = vector.broadcast %65 : vector<1x256xf32> to vector<4x256xf32>
    %67 = arith.mulf %64, %66 : vector<4x256xf32>
    %c0_19 = arith.constant 0 : index
    %c0_20 = arith.constant 0 : index
    %68 = vector.load %arg6[%c0_19, %c0_20] : memref<8x256xf32, #tpu.memory_space<vmem>>, vector<4x256xf32>
    tpu.vector_store %arg6[%c0_19, %c0_20], %67 {strides = array<i32>} : memref<8x256xf32, #tpu.memory_space<vmem>>, vector<4x256xf32>,
    %69 = vector.extract_strided_slice %0 {offsets = [4, 0], sizes = [4, 256], strides = [1, 1]} : vector<8x256xf32> to vector<4x256xf32>
    %70 = vector.extract_strided_slice %63 {offsets = [1, 0], sizes = [1, 256], strides = [1, 1]} : vector<2x256xf32> to vector<1x256xf32>
    %71 = vector.broadcast %70 : vector<1x256xf32> to vector<4x256xf32>
    %72 = arith.mulf %69, %71 : vector<4x256xf32>
    %c4 = arith.constant 4 : index
    %c0_21 = arith.constant 0 : index
    %73 = vector.load %arg6[%c4, %c0_21] : memref<8x256xf32, #tpu.memory_space<vmem>>, vector<4x256xf32>
    tpu.vector_store %arg6[%c4, %c0_21], %72 {strides = array<i32>} : memref<8x256xf32, #tpu.memory_space<vmem>>, vector<4x256xf32>,
    return
  }
  func.func @transform_0(%arg0: i32) -> (i32, i32) {
    %c0_i32 = arith.constant 0 : i32
    %c0_i32_0 = arith.constant 0 : i32
    return %arg0, %c0_i32 : i32, i32
  }
  func.func @transform_1(%arg0: i32) -> (i32, i32) {
    %c0_i32 = arith.constant 0 : i32
    %c0_i32_0 = arith.constant 0 : i32
    %c0_i32_1 = arith.constant 0 : i32
    return %c0_i32, %c0_i32_0 : i32, i32
  }
  func.func @transform_2(%arg0: i32) -> (i32, i32) {
    %c0_i32 = arith.constant 0 : i32
    %c0_i32_0 = arith.constant 0 : i32
    %c0_i32_1 = arith.constant 0 : i32
    return %c0_i32, %c0_i32_0 : i32, i32
  }
  func.func @transform_3(%arg0: i32) -> (i32, i32) {
    %c0_i32 = arith.constant 0 : i32
    %c0_i32_0 = arith.constant 0 : i32
    %c0_i32_1 = arith.constant 0 : i32
    return %c0_i32, %c0_i32_0 : i32, i32
  }
  func.func @transform_4(%arg0: i32) -> i32 {
    %c0_i32 = arith.constant 0 : i32
    %c0_i32_0 = arith.constant 0 : i32
    return %c0_i32 : i32
  }
  func.func @transform_5(%arg0: i32) -> (i32, i32) {
    %c0_i32 = arith.constant 0 : i32
    %c0_i32_0 = arith.constant 0 : i32
    return %arg0, %c0_i32 : i32, i32
  }
}

</mosaic_0001>

<llo_original>
// kernel: tpu_custom_call.1
$region0: #{tpu_custom_call.1}
  #allocation0 [shape = 'u32[]', space=smem, size = 0x4, offset = 0x4, fixed_abs, tag = 'smem constant byte address 0x4 - core index']
  #allocation1 [shape = 'u32[72,128]{1,0:T(1,128)}', space=vmem, size = 0x9000, scoped, tag = 'internal scratch']
  #allocation2 [shape = 'f32[1]{0:T(128)S(6)}', space=smem, size = 0x200, scoped, tag = 'scoped memory for tpu_custom_call.1']
  %s0 = inlined_call_operand.vmem [shape: f32[8,256], index: 0, kind: input, shape index: {}]
  %s1 = inlined_call_operand.vmem [shape: f32[64,24], index: 1, kind: input, shape index: {}]
  %s2 = inlined_call_operand.vmem [shape: f32[64,1], index: 2, kind: input, shape index: {}]
  %s3 = inlined_call_operand.vmem [shape: f32[6,64], index: 3, kind: input, shape index: {}]
  %s4 = inlined_call_operand.<no memory space> [shape: f32[1], index: 4, kind: input, shape index: {}]
  %s5 = inlined_call_operand.hbm [shape: f32[8,256], index: 5, kind: output, shape index: {}]
  %s6 = sld [smem:[#allocation0]]
  $region30: #{tpu_custom_call.1} parent=0
    _
  %s8 = ssub.s32 1, %s6
  %s9 = scalar_select 0, %s8, %s6
  %10 = sst [smem:[#allocation2]] %s4
  $region1: #{tpu_custom_call.1} parent=0
    #allocation3 [shape = 'u8[8192]{0}', space=vmem, size = 0x2000, scoped, tag = 'output window, operand 0, single buffered']
    #allocation4 [shape = 's32[1]{0}', space=sflag, size = 0x4, scoped, tag = 'scoped memory for tpu_custom_call.1']
    %11 = vsyncpa [#allocation4], 0
    // Predicated region
    $region2: #{tpu_custom_call.1} parent=1 // pred_check
      _
    $region3: #{tpu_custom_call.1} parent=1 // pred_check_branch
      %13 = sbr.rel (0) target = $region5
    $region4: #{tpu_custom_call.1} parent=1 // pred_region
      _
    $region5: #{tpu_custom_call.1} parent=1 // pred_fallthru
      _
    // Predicated region
    $region6: #{tpu_custom_call.1} parent=1 // pred_check
      _
    $region7: #{tpu_custom_call.1} parent=1 // pred_check_branch
      %15 = sbr.rel (0) target = $region9
    $region8: #{tpu_custom_call.1} parent=1 // pred_region
      _
    $region9: #{tpu_custom_call.1} parent=1 // pred_fallthru
      _
    // Predicated region
    $region10: #{tpu_custom_call.1} parent=1 // pred_check
      _
    $region11: #{tpu_custom_call.1} parent=1 // pred_check_branch
      %17 = sbr.rel (0) target = $region13
    $region12: #{tpu_custom_call.1} parent=1 // pred_region
      _
    $region13: #{tpu_custom_call.1} parent=1 // pred_fallthru
      _
    // Predicated region
    $region14: #{tpu_custom_call.1} parent=1 // pred_check
      _
    $region15: #{tpu_custom_call.1} parent=1 // pred_check_branch
      %19 = sbr.rel (0) target = $region17
    $region16: #{tpu_custom_call.1} parent=1 // pred_region
      _
    $region17: #{tpu_custom_call.1} parent=1 // pred_fallthru
      _
    // Predicated region
    $region18: #{tpu_custom_call.1} parent=1 // pred_check
      _
    $region19: #{tpu_custom_call.1} parent=1 // pred_check_branch
      %21 = sbr.rel (0) target = $region21
    $region20: #{tpu_custom_call.1} parent=1 // pred_region
      _
    $region21: #{tpu_custom_call.1} parent=1 // pred_fallthru
      _
    %v22 = vld [vmem:[%s0] sm:$0xff]
    %v23 = vld [vmem:[%s0 + $0x8] sm:$0xff]
    %v24 = vlaneseq
    %v25 = vand.u32 %v24, 127
    %v26 = vadd.s32 %v25, 128
    %vm27 = vcmp.lt.s32.totalorder %v25, 16
    %vm28 = vcmp.lt.s32.totalorder %v26, 16
    %vm29 = vcmp.ge.s32.totalorder %v25, 240
    %vm30 = vcmp.ge.s32.totalorder %v26, 240
    %31 = vrot.lane.b32.xlu0 %v22, 16
    %v32 = vpop.permute.xlu0 %31
    %33 = vrot.lane.b32.xlu0 %v23, 16
    %v34 = vpop.permute.xlu0 %33
    %v35 = vsel %vm27, %v32, %v34
    %v36 = vsel %vm27, %v34, %v32
    %v37 = vsel %vm27, 1, 0
    %v38 = vsel %vm28, 1, 0
    %vm39 = vcmp.eq.s32.totalorder %v37, 1
    %vm40 = vcmp.eq.s32.totalorder %v38, 1
    %v41 = vsel %vm39, 0.0, %v36
    %v42 = vsel %vm40, 0.0, %v35
    %43 = vrot.lane.b32.xlu0 %v22, 112
    %v44 = vpop.permute.xlu0 %43
    %45 = vrot.lane.b32.xlu0 %v23, 112
    %v46 = vpop.permute.xlu0 %45
    %vm47 = vcmp.lt.s32.totalorder %v25, 112
    %v48 = vsel %vm47, %v44, %v46
    %v49 = vsel %vm47, %v46, %v44
    %v50 = vsel %vm29, 1, 0
    %v51 = vsel %vm30, 1, 0
    %vm52 = vcmp.eq.s32.totalorder %v50, 1
    %vm53 = vcmp.eq.s32.totalorder %v51, 1
    %v54 = vsel %vm52, 0.0, %v48
    %v55 = vsel %vm53, 0.0, %v49
    %v56 = vld [vmem:[%s1] sm:$0xff]
    %v57 = vld [vmem:[%s1 + $0x8] sm:$0xff]
    %v58 = vld [vmem:[%s1 + $0x10] sm:$0xff]
    %v59 = vld [vmem:[%s1 + $0x18] sm:$0xff]
    %v60 = vld [vmem:[%s1 + $0x20] sm:$0xff]
    %v61 = vld [vmem:[%s1 + $0x28] sm:$0xff]
    %v62 = vld [vmem:[%s1 + $0x30] sm:$0xff]
    %v63 = vld [vmem:[%s1 + $0x38] sm:$0xff]
    %v64 = vld [vmem:[%s2] sm:$0xff]
    %v65 = vld [vmem:[%s2 + $0x8] sm:$0xff]
    %v66 = vld [vmem:[%s2 + $0x10] sm:$0xff]
    %v67 = vld [vmem:[%s2 + $0x18] sm:$0xff]
    %v68 = vld [vmem:[%s2 + $0x20] sm:$0xff]
    %v69 = vld [vmem:[%s2 + $0x28] sm:$0xff]
    %v70 = vld [vmem:[%s2 + $0x30] sm:$0xff]
    %v71 = vld [vmem:[%s2 + $0x38] sm:$0xff]
    %73 = vset.pattern.permute.xlu0 0
    %74 = vperm.xlu0 %73, %v64
    %v75 = vpop.permute.xlu0 %74
    %78 = vset.pattern.permute.xlu0 0
    %79 = vperm.xlu0 %78, %v65
    %v80 = vpop.permute.xlu0 %79
    %83 = vset.pattern.permute.xlu0 0
    %84 = vperm.xlu0 %83, %v66
    %v85 = vpop.permute.xlu0 %84
    %88 = vset.pattern.permute.xlu0 0
    %89 = vperm.xlu0 %88, %v67
    %v90 = vpop.permute.xlu0 %89
    %93 = vset.pattern.permute.xlu0 0
    %94 = vperm.xlu0 %93, %v68
    %v95 = vpop.permute.xlu0 %94
    %98 = vset.pattern.permute.xlu0 0
    %99 = vperm.xlu0 %98, %v69
    %v100 = vpop.permute.xlu0 %99
    %103 = vset.pattern.permute.xlu0 0
    %104 = vperm.xlu0 %103, %v70
    %v105 = vpop.permute.xlu0 %104
    %108 = vset.pattern.permute.xlu0 0
    %109 = vperm.xlu0 %108, %v71
    %v110 = vpop.permute.xlu0 %109
    %vm112 = vcmask 195584
    %v114 = vsel %vm112, %v56, 0
    %v117 = vsel %vm112, %v57, 0
    %v120 = vsel %vm112, %v58, 0
    %v123 = vsel %vm112, %v59, 0
    %v126 = vsel %vm112, %v60, 0
    %v129 = vsel %vm112, %v61, 0
    %v132 = vsel %vm112, %v62, 0
    %v135 = vsel %vm112, %v63, 0
    %137 = vmatpush.msra.mxu0 0.0
    %138 = vmatpush.msra.mxu0 0.0
    %139 = vmatpush.msra.mxu0 0.0
    %140 = vmatpush.msra.mxu0 0.0
    %141 = vmatpush.msra.mxu0 0.0
    %142 = vmatpush.msra.mxu0 0.0
    %143 = vmatpush.msra.mxu0 0.0
    %144 = vmatpush.msra.mxu0 0.0
    %145 = vmatpush.msra.mxu0 0.0
    %146 = vmatpush.msra.mxu0 0.0
    %147 = vmatpush.msra.mxu0 0.0
    %148 = vmatpush.msra.mxu0 0.0
    %149 = vmatpush.msra.mxu0 0.0
    %150 = vmatpush.msra.mxu0 %v54
    %151 = vmatpush.msra.mxu0 %v22
    %152 = vmatpush.msra.mxu0 %v41
    %153 = vmatmul.f32.gmra.mxu0 %v114
    %v154 = vpop.f32.mrf.mxu0
    %v155 = vadd.f32 %v75, %v154
    %156 = vmatmul.f32.gmra.mxu0 %v117
    %v157 = vpop.f32.mrf.mxu0
    %v158 = vadd.f32 %v80, %v157
    %159 = vmatmul.f32.gmra.mxu0 %v120
    %v160 = vpop.f32.mrf.mxu0
    %v161 = vadd.f32 %v85, %v160
    %162 = vmatmul.f32.gmra.mxu0 %v123
    %v163 = vpop.f32.mrf.mxu0
    %v164 = vadd.f32 %v90, %v163
    %165 = vmatmul.f32.gmra.mxu0 %v126
    %v166 = vpop.f32.mrf.mxu0
    %v167 = vadd.f32 %v95, %v166
    %168 = vmatmul.f32.gmra.mxu0 %v129
    %v169 = vpop.f32.mrf.mxu0
    %v170 = vadd.f32 %v100, %v169
    %171 = vmatmul.f32.gmra.mxu0 %v132
    %v172 = vpop.f32.mrf.mxu0
    %v173 = vadd.f32 %v105, %v172
    %174 = vmatmul.f32.gmra.mxu0 %v135
    %v175 = vpop.f32.mrf.mxu0
    %v176 = vadd.f32 %v110, %v175
    %177 = vdwg.mxu0
    %178 = vmatpush.msra.mxu0 0.0
    %179 = vmatpush.msra.mxu0 0.0
    %180 = vmatpush.msra.mxu0 0.0
    %181 = vmatpush.msra.mxu0 0.0
    %182 = vmatpush.msra.mxu0 0.0
    %183 = vmatpush.msra.mxu0 0.0
    %184 = vmatpush.msra.mxu0 0.0
    %185 = vmatpush.msra.mxu0 0.0
    %186 = vmatpush.msra.mxu0 0.0
    %187 = vmatpush.msra.mxu0 0.0
    %188 = vmatpush.msra.mxu0 0.0
    %189 = vmatpush.msra.mxu0 0.0
    %190 = vmatpush.msra.mxu0 0.0
    %191 = vmatpush.msra.mxu0 %v55
    %192 = vmatpush.msra.mxu0 %v23
    %193 = vmatpush.msra.mxu0 %v42
    %194 = vmatmul.f32.gmra.mxu0 %v114
    %v195 = vpop.f32.mrf.mxu0
    %v196 = vadd.f32 %v75, %v195
    %197 = vmatmul.f32.gmra.mxu0 %v117
    %v198 = vpop.f32.mrf.mxu0
    %v199 = vadd.f32 %v80, %v198
    %200 = vmatmul.f32.gmra.mxu0 %v120
    %v201 = vpop.f32.mrf.mxu0
    %v202 = vadd.f32 %v85, %v201
    %203 = vmatmul.f32.gmra.mxu0 %v123
    %v204 = vpop.f32.mrf.mxu0
    %v205 = vadd.f32 %v90, %v204
    %206 = vmatmul.f32.gmra.mxu0 %v126
    %v207 = vpop.f32.mrf.mxu0
    %v208 = vadd.f32 %v95, %v207
    %209 = vmatmul.f32.gmra.mxu0 %v129
    %v210 = vpop.f32.mrf.mxu0
    %v211 = vadd.f32 %v100, %v210
    %212 = vmatmul.f32.gmra.mxu0 %v132
    %v213 = vpop.f32.mrf.mxu0
    %v214 = vadd.f32 %v105, %v213
    %215 = vmatmul.f32.gmra.mxu0 %v135
    %v216 = vpop.f32.mrf.mxu0
    %v217 = vadd.f32 %v110, %v216
    %218 = vdwg.mxu0
    %v219 = vsub.f32 0.0, %v155
    %v220 = vsub.f32 0.0, %v196
    %v221 = vsub.f32 0.0, %v158
    %v222 = vsub.f32 0.0, %v199
    %v223 = vsub.f32 0.0, %v161
    %v224 = vsub.f32 0.0, %v202
    %v225 = vsub.f32 0.0, %v164
    %v226 = vsub.f32 0.0, %v205
    %v227 = vsub.f32 0.0, %v167
    %v228 = vsub.f32 0.0, %v208
    %v229 = vsub.f32 0.0, %v170
    %v230 = vsub.f32 0.0, %v211
    %v231 = vsub.f32 0.0, %v173
    %v232 = vsub.f32 0.0, %v214
    %v233 = vsub.f32 0.0, %v176
    %v234 = vsub.f32 0.0, %v217
    %v235 = vmul.f32 %v219, 1.442695
    %v236 = vpow.pop %v235
    %v237 = vmul.f32 %v220, 1.442695
    %v238 = vpow.pop %v237
    %v239 = vmul.f32 %v221, 1.442695
    %v240 = vpow.pop %v239
    %v241 = vmul.f32 %v222, 1.442695
    %v242 = vpow.pop %v241
    %v243 = vmul.f32 %v223, 1.442695
    %v244 = vpow.pop %v243
    %v245 = vmul.f32 %v224, 1.442695
    %v246 = vpow.pop %v245
    %v247 = vmul.f32 %v225, 1.442695
    %v248 = vpow.pop %v247
    %v249 = vmul.f32 %v226, 1.442695
    %v250 = vpow.pop %v249
    %v251 = vmul.f32 %v227, 1.442695
    %v252 = vpow.pop %v251
    %v253 = vmul.f32 %v228, 1.442695
    %v254 = vpow.pop %v253
    %v255 = vmul.f32 %v229, 1.442695
    %v256 = vpow.pop %v255
    %v257 = vmul.f32 %v230, 1.442695
    %v258 = vpow.pop %v257
    %v259 = vmul.f32 %v231, 1.442695
    %v260 = vpow.pop %v259
    %v261 = vmul.f32 %v232, 1.442695
    %v262 = vpow.pop %v261
    %v263 = vmul.f32 %v233, 1.442695
    %v264 = vpow.pop %v263
    %v265 = vmul.f32 %v234, 1.442695
    %v266 = vpow.pop %v265
    %v267 = vadd.f32 %v236, 1.0
    %v268 = vadd.f32 %v238, 1.0
    %v269 = vadd.f32 %v240, 1.0
    %v270 = vadd.f32 %v242, 1.0
    %v271 = vadd.f32 %v244, 1.0
    %v272 = vadd.f32 %v246, 1.0
    %v273 = vadd.f32 %v248, 1.0
    %v274 = vadd.f32 %v250, 1.0
    %v275 = vadd.f32 %v252, 1.0
    %v276 = vadd.f32 %v254, 1.0
    %v277 = vadd.f32 %v256, 1.0
    %v278 = vadd.f32 %v258, 1.0
    %v279 = vadd.f32 %v260, 1.0
    %v280 = vadd.f32 %v262, 1.0
    %v281 = vadd.f32 %v264, 1.0
    %v282 = vadd.f32 %v266, 1.0
    %v283 = vrcp.pop %v267
    %v284 = vmul.f32 %v267, %v283
    %v285 = vsub.f32 1.0, %v284
    %v286 = vmul.f32 %v283, %v285
    %v287 = vadd.f32 %v283, %v286
    %vm288 = vweird.f32 %v267
    %vm289 = vweird.f32 %v283
    %vm290 = vmor %vm288, %vm289
    %v291 = vsel %vm290, %v283, %v287
    %v292 = vand.u32 2147483647, %v267
    %vm293 = vcmp.eq.f32.partialorder %v292, 8.507059e+37
    %v294 = vand.u32 %v267, 2147483648
    %v295 = vor.u32 1.1754944e-38, %v294
    %v296 = vsel %vm293, %v295, %v291
    %v297 = vmul.f32 1.0, %v296
    %v298 = vrcp.pop %v268
    %v299 = vmul.f32 %v268, %v298
    %v300 = vsub.f32 1.0, %v299
    %v301 = vmul.f32 %v298, %v300
    %v302 = vadd.f32 %v298, %v301
    %vm303 = vweird.f32 %v268
    %vm304 = vweird.f32 %v298
    %vm305 = vmor %vm303, %vm304
    %v306 = vsel %vm305, %v298, %v302
    %v307 = vand.u32 2147483647, %v268
    %vm308 = vcmp.eq.f32.partialorder %v307, 8.507059e+37
    %v309 = vand.u32 %v268, 2147483648
    %v310 = vor.u32 1.1754944e-38, %v309
    %v311 = vsel %vm308, %v310, %v306
    %v312 = vmul.f32 1.0, %v311
    %v313 = vrcp.pop %v269
    %v314 = vmul.f32 %v269, %v313
    %v315 = vsub.f32 1.0, %v314
    %v316 = vmul.f32 %v313, %v315
    %v317 = vadd.f32 %v313, %v316
    %vm318 = vweird.f32 %v269
    %vm319 = vweird.f32 %v313
    %vm320 = vmor %vm318, %vm319
    %v321 = vsel %vm320, %v313, %v317
    %v322 = vand.u32 2147483647, %v269
    %vm323 = vcmp.eq.f32.partialorder %v322, 8.507059e+37
    %v324 = vand.u32 %v269, 2147483648
    %v325 = vor.u32 1.1754944e-38, %v324
    %v326 = vsel %vm323, %v325, %v321
    %v327 = vmul.f32 1.0, %v326
    %v328 = vrcp.pop %v270
    %v329 = vmul.f32 %v270, %v328
    %v330 = vsub.f32 1.0, %v329
    %v331 = vmul.f32 %v328, %v330
    %v332 = vadd.f32 %v328, %v331
    %vm333 = vweird.f32 %v270
    %vm334 = vweird.f32 %v328
    %vm335 = vmor %vm333, %vm334
    %v336 = vsel %vm335, %v328, %v332
    %v337 = vand.u32 2147483647, %v270
    %vm338 = vcmp.eq.f32.partialorder %v337, 8.507059e+37
    %v339 = vand.u32 %v270, 2147483648
    %v340 = vor.u32 1.1754944e-38, %v339
    %v341 = vsel %vm338, %v340, %v336
    %v342 = vmul.f32 1.0, %v341
    %v343 = vrcp.pop %v271
    %v344 = vmul.f32 %v271, %v343
    %v345 = vsub.f32 1.0, %v344
    %v346 = vmul.f32 %v343, %v345
    %v347 = vadd.f32 %v343, %v346
    %vm348 = vweird.f32 %v271
    %vm349 = vweird.f32 %v343
    %vm350 = vmor %vm348, %vm349
    %v351 = vsel %vm350, %v343, %v347
    %v352 = vand.u32 2147483647, %v271
    %vm353 = vcmp.eq.f32.partialorder %v352, 8.507059e+37
    %v354 = vand.u32 %v271, 2147483648
    %v355 = vor.u32 1.1754944e-38, %v354
    %v356 = vsel %vm353, %v355, %v351
    %v357 = vmul.f32 1.0, %v356
    %v358 = vrcp.pop %v272
    %v359 = vmul.f32 %v272, %v358
    %v360 = vsub.f32 1.0, %v359
    %v361 = vmul.f32 %v358, %v360
    %v362 = vadd.f32 %v358, %v361
    %vm363 = vweird.f32 %v272
    %vm364 = vweird.f32 %v358
    %vm365 = vmor %vm363, %vm364
    %v366 = vsel %vm365, %v358, %v362
    %v367 = vand.u32 2147483647, %v272
    %vm368 = vcmp.eq.f32.partialorder %v367, 8.507059e+37
    %v369 = vand.u32 %v272, 2147483648
    %v370 = vor.u32 1.1754944e-38, %v369
    %v371 = vsel %vm368, %v370, %v366
    %v372 = vmul.f32 1.0, %v371
    %v373 = vrcp.pop %v273
    %v374 = vmul.f32 %v273, %v373
    %v375 = vsub.f32 1.0, %v374
    %v376 = vmul.f32 %v373, %v375
    %v377 = vadd.f32 %v373, %v376
    %vm378 = vweird.f32 %v273
    %vm379 = vweird.f32 %v373
    %vm380 = vmor %vm378, %vm379
    %v381 = vsel %vm380, %v373, %v377
    %v382 = vand.u32 2147483647, %v273
    %vm383 = vcmp.eq.f32.partialorder %v382, 8.507059e+37
    %v384 = vand.u32 %v273, 2147483648
    %v385 = vor.u32 1.1754944e-38, %v384
    %v386 = vsel %vm383, %v385, %v381
    %v387 = vmul.f32 1.0, %v386
    %v388 = vrcp.pop %v274
    %v389 = vmul.f32 %v274, %v388
    %v390 = vsub.f32 1.0, %v389
    %v391 = vmul.f32 %v388, %v390
    %v392 = vadd.f32 %v388, %v391
    %vm393 = vweird.f32 %v274
    %vm394 = vweird.f32 %v388
    %vm395 = vmor %vm393, %vm394
    %v396 = vsel %vm395, %v388, %v392
    %v397 = vand.u32 2147483647, %v274
    %vm398 = vcmp.eq.f32.partialorder %v397, 8.507059e+37
    %v399 = vand.u32 %v274, 2147483648
    %v400 = vor.u32 1.1754944e-38, %v399
    %v401 = vsel %vm398, %v400, %v396
    %v402 = vmul.f32 1.0, %v401
    %v403 = vrcp.pop %v275
    %v404 = vmul.f32 %v275, %v403
    %v405 = vsub.f32 1.0, %v404
    %v406 = vmul.f32 %v403, %v405
    %v407 = vadd.f32 %v403, %v406
    %vm408 = vweird.f32 %v275
    %vm409 = vweird.f32 %v403
    %vm410 = vmor %vm408, %vm409
    %v411 = vsel %vm410, %v403, %v407
    %v412 = vand.u32 2147483647, %v275
    %vm413 = vcmp.eq.f32.partialorder %v412, 8.507059e+37
    %v414 = vand.u32 %v275, 2147483648
    %v415 = vor.u32 1.1754944e-38, %v414
    %v416 = vsel %vm413, %v415, %v411
    %v417 = vmul.f32 1.0, %v416
    %v418 = vrcp.pop %v276
    %v419 = vmul.f32 %v276, %v418
    %v420 = vsub.f32 1.0, %v419
    %v421 = vmul.f32 %v418, %v420
    %v422 = vadd.f32 %v418, %v421
    %vm423 = vweird.f32 %v276
    %vm424 = vweird.f32 %v418
    %vm425 = vmor %vm423, %vm424
    %v426 = vsel %vm425, %v418, %v422
    %v427 = vand.u32 2147483647, %v276
    %vm428 = vcmp.eq.f32.partialorder %v427, 8.507059e+37
    %v429 = vand.u32 %v276, 2147483648
    %v430 = vor.u32 1.1754944e-38, %v429
    %v431 = vsel %vm428, %v430, %v426
    %v432 = vmul.f32 1.0, %v431
    %v433 = vrcp.pop %v277
    %v434 = vmul.f32 %v277, %v433
    %v435 = vsub.f32 1.0, %v434
    %v436 = vmul.f32 %v433, %v435
    %v437 = vadd.f32 %v433, %v436
    %vm438 = vweird.f32 %v277
    %vm439 = vweird.f32 %v433
    %vm440 = vmor %vm438, %vm439
    %v441 = vsel %vm440, %v433, %v437
    %v442 = vand.u32 2147483647, %v277
    %vm443 = vcmp.eq.f32.partialorder %v442, 8.507059e+37
    %v444 = vand.u32 %v277, 2147483648
    %v445 = vor.u32 1.1754944e-38, %v444
    %v446 = vsel %vm443, %v445, %v441
    %v447 = vmul.f32 1.0, %v446
    %v448 = vrcp.pop %v278
    %v449 = vmul.f32 %v278, %v448
    %v450 = vsub.f32 1.0, %v449
    %v451 = vmul.f32 %v448, %v450
    %v452 = vadd.f32 %v448, %v451
    %vm453 = vweird.f32 %v278
    %vm454 = vweird.f32 %v448
    %vm455 = vmor %vm453, %vm454
    %v456 = vsel %vm455, %v448, %v452
    %v457 = vand.u32 2147483647, %v278
    %vm458 = vcmp.eq.f32.partialorder %v457, 8.507059e+37
    %v459 = vand.u32 %v278, 2147483648
    %v460 = vor.u32 1.1754944e-38, %v459
    %v461 = vsel %vm458, %v460, %v456
    %v462 = vmul.f32 1.0, %v461
    %v463 = vrcp.pop %v279
    %v464 = vmul.f32 %v279, %v463
    %v465 = vsub.f32 1.0, %v464
    %v466 = vmul.f32 %v463, %v465
    %v467 = vadd.f32 %v463, %v466
    %vm468 = vweird.f32 %v279
    %vm469 = vweird.f32 %v463
    %vm470 = vmor %vm468, %vm469
    %v471 = vsel %vm470, %v463, %v467
    %v472 = vand.u32 2147483647, %v279
    %vm473 = vcmp.eq.f32.partialorder %v472, 8.507059e+37
    %v474 = vand.u32 %v279, 2147483648
    %v475 = vor.u32 1.1754944e-38, %v474
    %v476 = vsel %vm473, %v475, %v471
    %v477 = vmul.f32 1.0, %v476
    %v478 = vrcp.pop %v280
    %v479 = vmul.f32 %v280, %v478
    %v480 = vsub.f32 1.0, %v479
    %v481 = vmul.f32 %v478, %v480
    %v482 = vadd.f32 %v478, %v481
    %vm483 = vweird.f32 %v280
    %vm484 = vweird.f32 %v478
    %vm485 = vmor %vm483, %vm484
    %v486 = vsel %vm485, %v478, %v482
    %v487 = vand.u32 2147483647, %v280
    %vm488 = vcmp.eq.f32.partialorder %v487, 8.507059e+37
    %v489 = vand.u32 %v280, 2147483648
    %v490 = vor.u32 1.1754944e-38, %v489
    %v491 = vsel %vm488, %v490, %v486
    %v492 = vmul.f32 1.0, %v491
    %v493 = vrcp.pop %v281
    %v494 = vmul.f32 %v281, %v493
    %v495 = vsub.f32 1.0, %v494
    %v496 = vmul.f32 %v493, %v495
    %v497 = vadd.f32 %v493, %v496
    %vm498 = vweird.f32 %v281
    %vm499 = vweird.f32 %v493
    %vm500 = vmor %vm498, %vm499
    %v501 = vsel %vm500, %v493, %v497
    %v502 = vand.u32 2147483647, %v281
    %vm503 = vcmp.eq.f32.partialorder %v502, 8.507059e+37
    %v504 = vand.u32 %v281, 2147483648
    %v505 = vor.u32 1.1754944e-38, %v504
    %v506 = vsel %vm503, %v505, %v501
    %v507 = vmul.f32 1.0, %v506
    %v508 = vrcp.pop %v282
    %v509 = vmul.f32 %v282, %v508
    %v510 = vsub.f32 1.0, %v509
    %v511 = vmul.f32 %v508, %v510
    %v512 = vadd.f32 %v508, %v511
    %vm513 = vweird.f32 %v282
    %vm514 = vweird.f32 %v508
    %vm515 = vmor %vm513, %vm514
    %v516 = vsel %vm515, %v508, %v512
    %v517 = vand.u32 2147483647, %v282
    %vm518 = vcmp.eq.f32.partialorder %v517, 8.507059e+37
    %v519 = vand.u32 %v282, 2147483648
    %v520 = vor.u32 1.1754944e-38, %v519
    %v521 = vsel %vm518, %v520, %v516
    %v522 = vmul.f32 1.0, %v521
    %v523 = vld [vmem:[%s3] sm:$0x3f]
    %vm524 = vcmask 523264
    %v526 = vsel %vm524, %v523, 0
    %528 = vmatpush.msra.mxu0 0.0
    %529 = vmatpush.msra.mxu0 0.0
    %530 = vmatpush.msra.mxu0 0.0
    %531 = vmatpush.msra.mxu0 0.0
    %532 = vmatpush.msra.mxu0 0.0
    %533 = vmatpush.msra.mxu0 0.0
    %534 = vmatpush.msra.mxu0 0.0
    %535 = vmatpush.msra.mxu0 0.0
    %536 = vmatpush.msra.mxu0 %v507
    %537 = vmatpush.msra.mxu0 %v477
    %538 = vmatpush.msra.mxu0 %v447
    %539 = vmatpush.msra.mxu0 %v417
    %540 = vmatpush.msra.mxu0 %v387
    %541 = vmatpush.msra.mxu0 %v357
    %542 = vmatpush.msra.mxu0 %v327
    %543 = vmatpush.msra.mxu0 %v297
    %544 = vmatmul.f32.gmra.mxu0 %v526
    %v545 = vpop.f32.mrf.mxu0
    %v546 = vadd.f32 0.0, %v545
    %547 = vdwg.mxu0
    %548 = vmatpush.msra.mxu0 0.0
    %549 = vmatpush.msra.mxu0 0.0
    %550 = vmatpush.msra.mxu0 0.0
    %551 = vmatpush.msra.mxu0 0.0
    %552 = vmatpush.msra.mxu0 0.0
    %553 = vmatpush.msra.mxu0 0.0
    %554 = vmatpush.msra.mxu0 0.0
    %555 = vmatpush.msra.mxu0 0.0
    %556 = vmatpush.msra.mxu0 %v522
    %557 = vmatpush.msra.mxu0 %v492
    %558 = vmatpush.msra.mxu0 %v462
    %559 = vmatpush.msra.mxu0 %v432
    %560 = vmatpush.msra.mxu0 %v402
    %561 = vmatpush.msra.mxu0 %v372
    %562 = vmatpush.msra.mxu0 %v342
    %563 = vmatpush.msra.mxu0 %v312
    %564 = vmatmul.f32.gmra.mxu0 %v526
    %v565 = vpop.f32.mrf.mxu0
    %v566 = vadd.f32 0.0, %v565
    %567 = vdwg.mxu0
    %568 = vrot.lane.b32.xlu0 %v546, 16
    %v569 = vpop.permute.xlu0 %568
    %570 = vrot.lane.b32.xlu0 %v566, 16
    %v571 = vpop.permute.xlu0 %570
    %v572 = vsel %vm27, %v569, %v571
    %v573 = vsel %vm27, %v571, %v569
    %v574 = vsel %vm39, 0.0, %v573
    %v575 = vsel %vm40, 0.0, %v572
    %v578 = vrot.slane %v546, 2
    %v579 = vrot.slane %v566, 2
    %v582 = vadd.f32 %v574, %v578
    %v583 = vadd.f32 %v575, %v579
    %v584 = vrot.slane %v546, 4
    %v585 = vrot.slane %v566, 4
    %588 = vrot.lane.b32.xlu0 %v584, 112
    %v589 = vpop.permute.xlu0 %588
    %590 = vrot.lane.b32.xlu0 %v585, 112
    %v591 = vpop.permute.xlu0 %590
    %v592 = vsel %vm47, %v589, %v591
    %v593 = vsel %vm47, %v591, %v589
    %v594 = vsel %vm52, 0.0, %v592
    %v595 = vsel %vm53, 0.0, %v593
    %v596 = vadd.f32 %v582, %v594
    %v597 = vadd.f32 %v583, %v595
    %s598 = sld [smem:[#allocation2]]
    %v599 = vstv %s598
    %v600 = vadd.f32 %v596, %v599
    %v601 = vadd.f32 %v597, %v599
    %v602 = vsub.f32 0.0, %v600
    %v603 = vsub.f32 0.0, %v601
    %v604 = vmul.f32 %v602, 1.442695
    %v605 = vpow.pop %v604
    %v606 = vmul.f32 %v603, 1.442695
    %v607 = vpow.pop %v606
    %v608 = vadd.f32 %v605, 1.0
    %v609 = vadd.f32 %v607, 1.0
    %v610 = vrcp.pop %v608
    %v611 = vmul.f32 %v608, %v610
    %v612 = vsub.f32 1.0, %v611
    %v613 = vmul.f32 %v610, %v612
    %v614 = vadd.f32 %v610, %v613
    %vm615 = vweird.f32 %v608
    %vm616 = vweird.f32 %v610
    %vm617 = vmor %vm615, %vm616
    %v618 = vsel %vm617, %v610, %v614
    %v619 = vand.u32 2147483647, %v608
    %vm620 = vcmp.eq.f32.partialorder %v619, 8.507059e+37
    %v621 = vand.u32 %v608, 2147483648
    %v622 = vor.u32 1.1754944e-38, %v621
    %v623 = vsel %vm620, %v622, %v618
    %v624 = vmul.f32 1.0, %v623
    %v625 = vrcp.pop %v609
    %v626 = vmul.f32 %v609, %v625
    %v627 = vsub.f32 1.0, %v626
    %v628 = vmul.f32 %v625, %v627
    %v629 = vadd.f32 %v625, %v628
    %vm630 = vweird.f32 %v609
    %vm631 = vweird.f32 %v625
    %vm632 = vmor %vm630, %vm631
    %v633 = vsel %vm632, %v625, %v629
    %v634 = vand.u32 2147483647, %v609
    %vm635 = vcmp.eq.f32.partialorder %v634, 8.507059e+37
    %v636 = vand.u32 %v609, 2147483648
    %v637 = vor.u32 1.1754944e-38, %v636
    %v638 = vsel %vm635, %v637, %v633
    %v639 = vmul.f32 1.0, %v638
    %v640 = vperm.slane %v624, 0
    %v641 = vperm.slane %v639, 0
    %v642 = vmul.f32 %v22, %v640
    %v643 = vmul.f32 %v23, %v641
    %644 = vst [vmem:[#allocation3] sm:$0xf] %v642
    %645 = vst [vmem:[#allocation3 + $0x8] sm:$0xf] %v643
    %v646 = vperm.slane %v624, 1
    %v647 = vperm.slane %v639, 1
    %v648 = vmul.f32 %v22, %v646
    %v649 = vmul.f32 %v23, %v647
    %650 = vst [vmem:[#allocation3] sm:$0xf0] %v648
    %651 = vst [vmem:[#allocation3 + $0x8] sm:$0xf0] %v649
    // Predicated region
    $region22: #{tpu_custom_call.1} parent=1 // pred_check
      _
    $region23: #{tpu_custom_call.1} parent=1 // pred_check_branch
      %653 = sbr.rel (0) target = $region25
    $region24: #{tpu_custom_call.1} parent=1 // pred_region
      %655 = vsyncadd [#allocation4], 0
      %s657 = sshll.u32 [#allocation3], 4
      %s658 = int_to_ptr.vmem [resolvable:$true] %s657
      %s659 = sshll.u32 %s5, 4
      %s660 = int_to_ptr.hbm [resolvable:$true] %s659
      %662 = dma.vmem_to_hbm [thread:$0]  %s658, 256, %s660, [#allocation4]
    $region25: #{tpu_custom_call.1} parent=1 // pred_fallthru
      _
    // Predicated region
    $region26: #{tpu_custom_call.1} parent=1 // pred_check
      _
    $region27: #{tpu_custom_call.1} parent=1 // pred_check_branch
      %664 = sbr.rel (0) target = $region29
    $region28: #{tpu_custom_call.1} parent=1 // pred_region
      %666 = dma.done [#allocation4], 256
    $region29: #{tpu_custom_call.1} parent=1 // pred_fallthru
      _
    %667 = vsyncpa [#allocation4], 1

// kernel: tpu_custom_call.1
$region0: #{tpu_custom_call.1}
  #allocation0 [shape = 'u32[]', space=smem, size = 0x4, offset = 0x4, fixed_abs, tag = 'smem constant byte address 0x4 - core index']
  #allocation1 [shape = 'u32[72,128]{1,0:T(1,128)}', space=vmem, size = 0x9000, scoped, tag = 'internal scratch']
  #allocation2 [shape = 'f32[1]{0:T(128)S(6)}', space=smem, size = 0x200, scoped, tag = 'scoped memory for tpu_custom_call.1']
  %s0 = inlined_call_operand.vmem [shape: f32[8,256], index: 0, kind: input, shape index: {}]
  %s1 = inlined_call_operand.vmem [shape: f32[64,24], index: 1, kind: input, shape index: {}]
  %s2 = inlined_call_operand.vmem [shape: f32[64,1], index: 2, kind: input, shape index: {}]
  %s3 = inlined_call_operand.vmem [shape: f32[6,64], index: 3, kind: input, shape index: {}]
  %s4 = inlined_call_operand.<no memory space> [shape: f32[1], index: 4, kind: input, shape index: {}]
  %s5 = inlined_call_operand.hbm [shape: f32[8,256], index: 5, kind: output, shape index: {}]
  %s6 = sld [smem:[#allocation0]]
  $region30: #{tpu_custom_call.1} parent=0
    _
  %s8 = ssub.s32 1, %s6
  %s9 = scalar_select 0, %s8, %s6
  %10 = sst [smem:[#allocation2]] %s4
  $region1: #{tpu_custom_call.1} parent=0
    #allocation3 [shape = 'u8[8192]{0}', space=vmem, size = 0x2000, scoped, tag = 'output window, operand 0, single buffered']
    #allocation4 [shape = 's32[1]{0}', space=sflag, size = 0x4, scoped, tag = 'scoped memory for tpu_custom_call.1']
    %11 = vsyncpa [#allocation4], 0
    // Predicated region
    $region2: #{tpu_custom_call.1} parent=1 // pred_check
      _
    $region3: #{tpu_custom_call.1} parent=1 // pred_check_branch
      %13 = sbr.rel (0) target = $region5
    $region4: #{tpu_custom_call.1} parent=1 // pred_region
      _
    $region5: #{tpu_custom_call.1} parent=1 // pred_fallthru
      _
    // Predicated region
    $region6: #{tpu_custom_call.1} parent=1 // pred_check
      _
    $region7: #{tpu_custom_call.1} parent=1 // pred_check_branch
      %15 = sbr.rel (0) target = $region9
    $region8: #{tpu_custom_call.1} parent=1 // pred_region
      _
    $region9: #{tpu_custom_call.1} parent=1 // pred_fallthru
      _
    // Predicated region
    $region10: #{tpu_custom_call.1} parent=1 // pred_check
      _
    $region11: #{tpu_custom_call.1} parent=1 // pred_check_branch
      %17 = sbr.rel (0) target = $region13
    $region12: #{tpu_custom_call.1} parent=1 // pred_region
      _
    $region13: #{tpu_custom_call.1} parent=1 // pred_fallthru
      _
    // Predicated region
    $region14: #{tpu_custom_call.1} parent=1 // pred_check
      _
    $region15: #{tpu_custom_call.1} parent=1 // pred_check_branch
      %19 = sbr.rel (0) target = $region17
    $region16: #{tpu_custom_call.1} parent=1 // pred_region
      _
    $region17: #{tpu_custom_call.1} parent=1 // pred_fallthru
      _
    // Predicated region
    $region18: #{tpu_custom_call.1} parent=1 // pred_check
      _
    $region19: #{tpu_custom_call.1} parent=1 // pred_check_branch
      %21 = sbr.rel (0) target = $region21
    $region20: #{tpu_custom_call.1} parent=1 // pred_region
      _
    $region21: #{tpu_custom_call.1} parent=1 // pred_fallthru
      _
    %v22 = vld [vmem:[%s0] sm:$0xff]
    %v23 = vld [vmem:[%s0 + $0x8] sm:$0xff]
    %v24 = vlaneseq
    %v25 = vand.u32 %v24, 127
    %v26 = vadd.s32 %v25, 128
    %vm27 = vcmp.lt.s32.totalorder %v25, 16
    %vm28 = vcmp.lt.s32.totalorder %v26, 16
    %vm29 = vcmp.ge.s32.totalorder %v25, 240
    %vm30 = vcmp.ge.s32.totalorder %v26, 240
    %32 = vrot.lane.b32.xlu0 %v23, 16
    %v33 = vpop.permute.xlu0 %32
    %36 = vrot.lane.b32.xlu0 %v22, 16
    %v37 = vpop.permute.xlu0 %36
    %vm38 = vcmask 130048
    %v39 = vsel %vm38, %v37, %v33
    %v42 = vsel %vm38, %v33, %v37
    %v43 = vsel %vm27, 1, 0
    %v44 = vsel %vm28, 1, 0
    %vm45 = vcmp.eq.s32.totalorder %v43, 1
    %vm46 = vcmp.eq.s32.totalorder %v44, 1
    %v47 = vsel %vm45, 0.0, %v42
    %v48 = vsel %vm46, 0.0, %v39
    %49 = vrot.lane.b32.xlu0 %v22, 112
    %v50 = vpop.permute.xlu0 %49
    %51 = vrot.lane.b32.xlu0 %v23, 112
    %v52 = vpop.permute.xlu0 %51
    %vm53 = vcmask 916480
    %v54 = vsel %vm53, %v50, %v52
    %v58 = vsel %vm53, %v52, %v50
    %v59 = vsel %vm29, 1, 0
    %v60 = vsel %vm30, 1, 0
    %vm61 = vcmp.eq.s32.totalorder %v59, 1
    %vm62 = vcmp.eq.s32.totalorder %v60, 1
    %v63 = vsel %vm61, 0.0, %v54
    %v64 = vsel %vm62, 0.0, %v58
    %v65 = vld [vmem:[%s1] sm:$0xff]
    %v66 = vld [vmem:[%s1 + $0x8] sm:$0xff]
    %v67 = vld [vmem:[%s1 + $0x10] sm:$0xff]
    %v68 = vld [vmem:[%s1 + $0x18] sm:$0xff]
    %v69 = vld [vmem:[%s1 + $0x20] sm:$0xff]
    %v70 = vld [vmem:[%s1 + $0x28] sm:$0xff]
    %v71 = vld [vmem:[%s1 + $0x30] sm:$0xff]
    %v72 = vld [vmem:[%s1 + $0x38] sm:$0xff]
    %v73 = vld [vmem:[%s2] sm:$0xff]
    %v74 = vld [vmem:[%s2 + $0x8] sm:$0xff]
    %v75 = vld [vmem:[%s2 + $0x10] sm:$0xff]
    %v76 = vld [vmem:[%s2 + $0x18] sm:$0xff]
    %v77 = vld [vmem:[%s2 + $0x20] sm:$0xff]
    %v78 = vld [vmem:[%s2 + $0x28] sm:$0xff]
    %v79 = vld [vmem:[%s2 + $0x30] sm:$0xff]
    %v80 = vld [vmem:[%s2 + $0x38] sm:$0xff]
    %82 = vset.pattern.permute.xlu0 0
    %83 = vperm.xlu0 %82, %v73
    %v84 = vpop.permute.xlu0 %83
    %87 = vset.pattern.permute.xlu0 0
    %88 = vperm.xlu0 %87, %v74
    %v89 = vpop.permute.xlu0 %88
    %92 = vset.pattern.permute.xlu0 0
    %93 = vperm.xlu0 %92, %v75
    %v94 = vpop.permute.xlu0 %93
    %97 = vset.pattern.permute.xlu0 0
    %98 = vperm.xlu0 %97, %v76
    %v99 = vpop.permute.xlu0 %98
    %102 = vset.pattern.permute.xlu0 0
    %103 = vperm.xlu0 %102, %v77
    %v104 = vpop.permute.xlu0 %103
    %107 = vset.pattern.permute.xlu0 0
    %108 = vperm.xlu0 %107, %v78
    %v109 = vpop.permute.xlu0 %108
    %112 = vset.pattern.permute.xlu0 0
    %113 = vperm.xlu0 %112, %v79
    %v114 = vpop.permute.xlu0 %113
    %117 = vset.pattern.permute.xlu0 0
    %118 = vperm.xlu0 %117, %v80
    %v119 = vpop.permute.xlu0 %118
    %vm121 = vcmask 195584
    %v123 = vsel %vm121, %v65, 0
    %v126 = vsel %vm121, %v66, 0
    %v129 = vsel %vm121, %v67, 0
    %v132 = vsel %vm121, %v68, 0
    %v135 = vsel %vm121, %v69, 0
    %v138 = vsel %vm121, %v70, 0
    %v141 = vsel %vm121, %v71, 0
    %v144 = vsel %vm121, %v72, 0
    %146 = vmatpush.msra.mxu0 0.0
    %147 = vmatpush.msra.mxu0 0.0
    %148 = vmatpush.msra.mxu0 0.0
    %149 = vmatpush.msra.mxu0 0.0
    %150 = vmatpush.msra.mxu0 0.0
    %151 = vmatpush.msra.mxu0 0.0
    %152 = vmatpush.msra.mxu0 0.0
    %153 = vmatpush.msra.mxu0 0.0
    %154 = vmatpush.msra.mxu0 0.0
    %155 = vmatpush.msra.mxu0 0.0
    %156 = vmatpush.msra.mxu0 0.0
    %157 = vmatpush.msra.mxu0 0.0
    %158 = vmatpush.msra.mxu0 0.0
    %159 = vmatpush.msra.mxu0 %v63
    %160 = vmatpush.msra.mxu0 %v22
    %161 = vmatpush.msra.mxu0 %v47
    %162 = vmatmul.f32.gmra.mxu0 %v123
    %v163 = vpop.f32.mrf.mxu0
    %v164 = vadd.f32 %v84, %v163
    %165 = vmatmul.f32.gmra.mxu0 %v126
    %v166 = vpop.f32.mrf.mxu0
    %v167 = vadd.f32 %v89, %v166
    %168 = vmatmul.f32.gmra.mxu0 %v129
    %v169 = vpop.f32.mrf.mxu0
    %v170 = vadd.f32 %v94, %v169
    %171 = vmatmul.f32.gmra.mxu0 %v132
    %v172 = vpop.f32.mrf.mxu0
    %v173 = vadd.f32 %v99, %v172
    %174 = vmatmul.f32.gmra.mxu0 %v135
    %v175 = vpop.f32.mrf.mxu0
    %v176 = vadd.f32 %v104, %v175
    %177 = vmatmul.f32.gmra.mxu0 %v138
    %v178 = vpop.f32.mrf.mxu0
    %v179 = vadd.f32 %v109, %v178
    %180 = vmatmul.f32.gmra.mxu0 %v141
    %v181 = vpop.f32.mrf.mxu0
    %v182 = vadd.f32 %v114, %v181
    %183 = vmatmul.f32.gmra.mxu0 %v144
    %v184 = vpop.f32.mrf.mxu0
    %v185 = vadd.f32 %v119, %v184
    %186 = vdwg.mxu0
    %187 = vmatpush.msra.mxu0 0.0
    %188 = vmatpush.msra.mxu0 0.0
    %189 = vmatpush.msra.mxu0 0.0
    %190 = vmatpush.msra.mxu0 0.0
    %191 = vmatpush.msra.mxu0 0.0
    %192 = vmatpush.msra.mxu0 0.0
    %193 = vmatpush.msra.mxu0 0.0
    %194 = vmatpush.msra.mxu0 0.0
    %195 = vmatpush.msra.mxu0 0.0
    %196 = vmatpush.msra.mxu0 0.0
    %197 = vmatpush.msra.mxu0 0.0
    %198 = vmatpush.msra.mxu0 0.0
    %199 = vmatpush.msra.mxu0 0.0
    %200 = vmatpush.msra.mxu0 %v64
    %201 = vmatpush.msra.mxu0 %v23
    %202 = vmatpush.msra.mxu0 %v48
    %203 = vmatmul.f32.gmra.mxu0 %v123
    %v204 = vpop.f32.mrf.mxu0
    %v205 = vadd.f32 %v84, %v204
    %206 = vmatmul.f32.gmra.mxu0 %v126
    %v207 = vpop.f32.mrf.mxu0
    %v208 = vadd.f32 %v89, %v207
    %209 = vmatmul.f32.gmra.mxu0 %v129
    %v210 = vpop.f32.mrf.mxu0
    %v211 = vadd.f32 %v94, %v210
    %212 = vmatmul.f32.gmra.mxu0 %v132
    %v213 = vpop.f32.mrf.mxu0
    %v214 = vadd.f32 %v99, %v213
    %215 = vmatmul.f32.gmra.mxu0 %v135
    %v216 = vpop.f32.mrf.mxu0
    %v217 = vadd.f32 %v104, %v216
    %218 = vmatmul.f32.gmra.mxu0 %v138
    %v219 = vpop.f32.mrf.mxu0
    %v220 = vadd.f32 %v109, %v219
    %221 = vmatmul.f32.gmra.mxu0 %v141
    %v222 = vpop.f32.mrf.mxu0
    %v223 = vadd.f32 %v114, %v222
    %224 = vmatmul.f32.gmra.mxu0 %v144
    %v225 = vpop.f32.mrf.mxu0
    %v226 = vadd.f32 %v119, %v225
    %227 = vdwg.mxu0
    %v228 = vsub.f32 0.0, %v164
    %v229 = vsub.f32 0.0, %v205
    %v230 = vsub.f32 0.0, %v167
    %v231 = vsub.f32 0.0, %v208
    %v232 = vsub.f32 0.0, %v170
    %v233 = vsub.f32 0.0, %v211
    %v234 = vsub.f32 0.0, %v173
    %v235 = vsub.f32 0.0, %v214
    %v236 = vsub.f32 0.0, %v176
    %v237 = vsub.f32 0.0, %v217
    %v238 = vsub.f32 0.0, %v179
    %v239 = vsub.f32 0.0, %v220
    %v240 = vsub.f32 0.0, %v182
    %v241 = vsub.f32 0.0, %v223
    %v242 = vsub.f32 0.0, %v185
    %v243 = vsub.f32 0.0, %v226
    %v244 = vmul.f32 %v228, 1.442695
    %v245 = vpow.pop %v244
    %v246 = vmul.f32 %v229, 1.442695
    %v247 = vpow.pop %v246
    %v248 = vmul.f32 %v230, 1.442695
    %v249 = vpow.pop %v248
    %v250 = vmul.f32 %v231, 1.442695
    %v251 = vpow.pop %v250
    %v252 = vmul.f32 %v232, 1.442695
    %v253 = vpow.pop %v252
    %v254 = vmul.f32 %v233, 1.442695
    %v255 = vpow.pop %v254
    %v256 = vmul.f32 %v234, 1.442695
    %v257 = vpow.pop %v256
    %v258 = vmul.f32 %v235, 1.442695
    %v259 = vpow.pop %v258
    %v260 = vmul.f32 %v236, 1.442695
    %v261 = vpow.pop %v260
    %v262 = vmul.f32 %v237, 1.442695
    %v263 = vpow.pop %v262
    %v264 = vmul.f32 %v238, 1.442695
    %v265 = vpow.pop %v264
    %v266 = vmul.f32 %v239, 1.442695
    %v267 = vpow.pop %v266
    %v268 = vmul.f32 %v240, 1.442695
    %v269 = vpow.pop %v268
    %v270 = vmul.f32 %v241, 1.442695
    %v271 = vpow.pop %v270
    %v272 = vmul.f32 %v242, 1.442695
    %v273 = vpow.pop %v272
    %v274 = vmul.f32 %v243, 1.442695
    %v275 = vpow.pop %v274
    %v276 = vadd.f32 %v245, 1.0
    %v277 = vadd.f32 %v247, 1.0
    %v278 = vadd.f32 %v249, 1.0
    %v279 = vadd.f32 %v251, 1.0
    %v280 = vadd.f32 %v253, 1.0
    %v281 = vadd.f32 %v255, 1.0
    %v282 = vadd.f32 %v257, 1.0
    %v283 = vadd.f32 %v259, 1.0
    %v284 = vadd.f32 %v261, 1.0
    %v285 = vadd.f32 %v263, 1.0
    %v286 = vadd.f32 %v265, 1.0
    %v287 = vadd.f32 %v267, 1.0
    %v288 = vadd.f32 %v269, 1.0
    %v289 = vadd.f32 %v271, 1.0
    %v290 = vadd.f32 %v273, 1.0
    %v291 = vadd.f32 %v275, 1.0
    %v292 = vrcp.pop %v276
    %v293 = vmul.f32 %v276, %v292
    %v294 = vsub.f32 1.0, %v293
    %v295 = vmul.f32 %v292, %v294
    %v296 = vadd.f32 %v292, %v295
    %vm297 = vweird.f32 %v276
    %vm298 = vweird.f32 %v292
    %vm299 = vmor %vm297, %vm298
    %v300 = vsel %vm299, %v292, %v296
    %v301 = vand.u32 2147483647, %v276
    %vm302 = vcmp.eq.f32.partialorder %v301, 8.507059e+37
    %v303 = vand.u32 %v276, 2147483648
    %v304 = vor.u32 1.1754944e-38, %v303
    %v305 = vsel %vm302, %v304, %v300
    %v306 = vmul.f32 1.0, %v305
    %v307 = vrcp.pop %v277
    %v308 = vmul.f32 %v277, %v307
    %v309 = vsub.f32 1.0, %v308
    %v310 = vmul.f32 %v307, %v309
    %v311 = vadd.f32 %v307, %v310
    %vm312 = vweird.f32 %v277
    %vm313 = vweird.f32 %v307
    %vm314 = vmor %vm312, %vm313
    %v315 = vsel %vm314, %v307, %v311
    %v316 = vand.u32 2147483647, %v277
    %vm317 = vcmp.eq.f32.partialorder %v316, 8.507059e+37
    %v318 = vand.u32 %v277, 2147483648
    %v319 = vor.u32 1.1754944e-38, %v318
    %v320 = vsel %vm317, %v319, %v315
    %v321 = vmul.f32 1.0, %v320
    %v322 = vrcp.pop %v278
    %v323 = vmul.f32 %v278, %v322
    %v324 = vsub.f32 1.0, %v323
    %v325 = vmul.f32 %v322, %v324
    %v326 = vadd.f32 %v322, %v325
    %vm327 = vweird.f32 %v278
    %vm328 = vweird.f32 %v322
    %vm329 = vmor %vm327, %vm328
    %v330 = vsel %vm329, %v322, %v326
    %v331 = vand.u32 2147483647, %v278
    %vm332 = vcmp.eq.f32.partialorder %v331, 8.507059e+37
    %v333 = vand.u32 %v278, 2147483648
    %v334 = vor.u32 1.1754944e-38, %v333
    %v335 = vsel %vm332, %v334, %v330
    %v336 = vmul.f32 1.0, %v335
    %v337 = vrcp.pop %v279
    %v338 = vmul.f32 %v279, %v337
    %v339 = vsub.f32 1.0, %v338
    %v340 = vmul.f32 %v337, %v339
    %v341 = vadd.f32 %v337, %v340
    %vm342 = vweird.f32 %v279
    %vm343 = vweird.f32 %v337
    %vm344 = vmor %vm342, %vm343
    %v345 = vsel %vm344, %v337, %v341
    %v346 = vand.u32 2147483647, %v279
    %vm347 = vcmp.eq.f32.partialorder %v346, 8.507059e+37
    %v348 = vand.u32 %v279, 2147483648
    %v349 = vor.u32 1.1754944e-38, %v348
    %v350 = vsel %vm347, %v349, %v345
    %v351 = vmul.f32 1.0, %v350
    %v352 = vrcp.pop %v280
    %v353 = vmul.f32 %v280, %v352
    %v354 = vsub.f32 1.0, %v353
    %v355 = vmul.f32 %v352, %v354
    %v356 = vadd.f32 %v352, %v355
    %vm357 = vweird.f32 %v280
    %vm358 = vweird.f32 %v352
    %vm359 = vmor %vm357, %vm358
    %v360 = vsel %vm359, %v352, %v356
    %v361 = vand.u32 2147483647, %v280
    %vm362 = vcmp.eq.f32.partialorder %v361, 8.507059e+37
    %v363 = vand.u32 %v280, 2147483648
    %v364 = vor.u32 1.1754944e-38, %v363
    %v365 = vsel %vm362, %v364, %v360
    %v366 = vmul.f32 1.0, %v365
    %v367 = vrcp.pop %v281
    %v368 = vmul.f32 %v281, %v367
    %v369 = vsub.f32 1.0, %v368
    %v370 = vmul.f32 %v367, %v369
    %v371 = vadd.f32 %v367, %v370
    %vm372 = vweird.f32 %v281
    %vm373 = vweird.f32 %v367
    %vm374 = vmor %vm372, %vm373
    %v375 = vsel %vm374, %v367, %v371
    %v376 = vand.u32 2147483647, %v281
    %vm377 = vcmp.eq.f32.partialorder %v376, 8.507059e+37
    %v378 = vand.u32 %v281, 2147483648
    %v379 = vor.u32 1.1754944e-38, %v378
    %v380 = vsel %vm377, %v379, %v375
    %v381 = vmul.f32 1.0, %v380
    %v382 = vrcp.pop %v282
    %v383 = vmul.f32 %v282, %v382
    %v384 = vsub.f32 1.0, %v383
    %v385 = vmul.f32 %v382, %v384
    %v386 = vadd.f32 %v382, %v385
    %vm387 = vweird.f32 %v282
    %vm388 = vweird.f32 %v382
    %vm389 = vmor %vm387, %vm388
    %v390 = vsel %vm389, %v382, %v386
    %v391 = vand.u32 2147483647, %v282
    %vm392 = vcmp.eq.f32.partialorder %v391, 8.507059e+37
    %v393 = vand.u32 %v282, 2147483648
    %v394 = vor.u32 1.1754944e-38, %v393
    %v395 = vsel %vm392, %v394, %v390
    %v396 = vmul.f32 1.0, %v395
    %v397 = vrcp.pop %v283
    %v398 = vmul.f32 %v283, %v397
    %v399 = vsub.f32 1.0, %v398
    %v400 = vmul.f32 %v397, %v399
    %v401 = vadd.f32 %v397, %v400
    %vm402 = vweird.f32 %v283
    %vm403 = vweird.f32 %v397
    %vm404 = vmor %vm402, %vm403
    %v405 = vsel %vm404, %v397, %v401
    %v406 = vand.u32 2147483647, %v283
    %vm407 = vcmp.eq.f32.partialorder %v406, 8.507059e+37
    %v408 = vand.u32 %v283, 2147483648
    %v409 = vor.u32 1.1754944e-38, %v408
    %v410 = vsel %vm407, %v409, %v405
    %v411 = vmul.f32 1.0, %v410
    %v412 = vrcp.pop %v284
    %v413 = vmul.f32 %v284, %v412
    %v414 = vsub.f32 1.0, %v413
    %v415 = vmul.f32 %v412, %v414
    %v416 = vadd.f32 %v412, %v415
    %vm417 = vweird.f32 %v284
    %vm418 = vweird.f32 %v412
    %vm419 = vmor %vm417, %vm418
    %v420 = vsel %vm419, %v412, %v416
    %v421 = vand.u32 2147483647, %v284
    %vm422 = vcmp.eq.f32.partialorder %v421, 8.507059e+37
    %v423 = vand.u32 %v284, 2147483648
    %v424 = vor.u32 1.1754944e-38, %v423
    %v425 = vsel %vm422, %v424, %v420
    %v426 = vmul.f32 1.0, %v425
    %v427 = vrcp.pop %v285
    %v428 = vmul.f32 %v285, %v427
    %v429 = vsub.f32 1.0, %v428
    %v430 = vmul.f32 %v427, %v429
    %v431 = vadd.f32 %v427, %v430
    %vm432 = vweird.f32 %v285
    %vm433 = vweird.f32 %v427
    %vm434 = vmor %vm432, %vm433
    %v435 = vsel %vm434, %v427, %v431
    %v436 = vand.u32 2147483647, %v285
    %vm437 = vcmp.eq.f32.partialorder %v436, 8.507059e+37
    %v438 = vand.u32 %v285, 2147483648
    %v439 = vor.u32 1.1754944e-38, %v438
    %v440 = vsel %vm437, %v439, %v435
    %v441 = vmul.f32 1.0, %v440
    %v442 = vrcp.pop %v286
    %v443 = vmul.f32 %v286, %v442
    %v444 = vsub.f32 1.0, %v443
    %v445 = vmul.f32 %v442, %v444
    %v446 = vadd.f32 %v442, %v445
    %vm447 = vweird.f32 %v286
    %vm448 = vweird.f32 %v442
    %vm449 = vmor %vm447, %vm448
    %v450 = vsel %vm449, %v442, %v446
    %v451 = vand.u32 2147483647, %v286
    %vm452 = vcmp.eq.f32.partialorder %v451, 8.507059e+37
    %v453 = vand.u32 %v286, 2147483648
    %v454 = vor.u32 1.1754944e-38, %v453
    %v455 = vsel %vm452, %v454, %v450
    %v456 = vmul.f32 1.0, %v455
    %v457 = vrcp.pop %v287
    %v458 = vmul.f32 %v287, %v457
    %v459 = vsub.f32 1.0, %v458
    %v460 = vmul.f32 %v457, %v459
    %v461 = vadd.f32 %v457, %v460
    %vm462 = vweird.f32 %v287
    %vm463 = vweird.f32 %v457
    %vm464 = vmor %vm462, %vm463
    %v465 = vsel %vm464, %v457, %v461
    %v466 = vand.u32 2147483647, %v287
    %vm467 = vcmp.eq.f32.partialorder %v466, 8.507059e+37
    %v468 = vand.u32 %v287, 2147483648
    %v469 = vor.u32 1.1754944e-38, %v468
    %v470 = vsel %vm467, %v469, %v465
    %v471 = vmul.f32 1.0, %v470
    %v472 = vrcp.pop %v288
    %v473 = vmul.f32 %v288, %v472
    %v474 = vsub.f32 1.0, %v473
    %v475 = vmul.f32 %v472, %v474
    %v476 = vadd.f32 %v472, %v475
    %vm477 = vweird.f32 %v288
    %vm478 = vweird.f32 %v472
    %vm479 = vmor %vm477, %vm478
    %v480 = vsel %vm479, %v472, %v476
    %v481 = vand.u32 2147483647, %v288
    %vm482 = vcmp.eq.f32.partialorder %v481, 8.507059e+37
    %v483 = vand.u32 %v288, 2147483648
    %v484 = vor.u32 1.1754944e-38, %v483
    %v485 = vsel %vm482, %v484, %v480
    %v486 = vmul.f32 1.0, %v485
    %v487 = vrcp.pop %v289
    %v488 = vmul.f32 %v289, %v487
    %v489 = vsub.f32 1.0, %v488
    %v490 = vmul.f32 %v487, %v489
    %v491 = vadd.f32 %v487, %v490
    %vm492 = vweird.f32 %v289
    %vm493 = vweird.f32 %v487
    %vm494 = vmor %vm492, %vm493
    %v495 = vsel %vm494, %v487, %v491
    %v496 = vand.u32 2147483647, %v289
    %vm497 = vcmp.eq.f32.partialorder %v496, 8.507059e+37
    %v498 = vand.u32 %v289, 2147483648
    %v499 = vor.u32 1.1754944e-38, %v498
    %v500 = vsel %vm497, %v499, %v495
    %v501 = vmul.f32 1.0, %v500
    %v502 = vrcp.pop %v290
    %v503 = vmul.f32 %v290, %v502
    %v504 = vsub.f32 1.0, %v503
    %v505 = vmul.f32 %v502, %v504
    %v506 = vadd.f32 %v502, %v505
    %vm507 = vweird.f32 %v290
    %vm508 = vweird.f32 %v502
    %vm509 = vmor %vm507, %vm508
    %v510 = vsel %vm509, %v502, %v506
    %v511 = vand.u32 2147483647, %v290
    %vm512 = vcmp.eq.f32.partialorder %v511, 8.507059e+37
    %v513 = vand.u32 %v290, 2147483648
    %v514 = vor.u32 1.1754944e-38, %v513
    %v515 = vsel %vm512, %v514, %v510
    %v516 = vmul.f32 1.0, %v515
    %v517 = vrcp.pop %v291
    %v518 = vmul.f32 %v291, %v517
    %v519 = vsub.f32 1.0, %v518
    %v520 = vmul.f32 %v517, %v519
    %v521 = vadd.f32 %v517, %v520
    %vm522 = vweird.f32 %v291
    %vm523 = vweird.f32 %v517
    %vm524 = vmor %vm522, %vm523
    %v525 = vsel %vm524, %v517, %v521
    %v526 = vand.u32 2147483647, %v291
    %vm527 = vcmp.eq.f32.partialorder %v526, 8.507059e+37
    %v528 = vand.u32 %v291, 2147483648
    %v529 = vor.u32 1.1754944e-38, %v528
    %v530 = vsel %vm527, %v529, %v525
    %v531 = vmul.f32 1.0, %v530
    %v532 = vld [vmem:[%s3] sm:$0x3f]
    %vm533 = vcmask 523264
    %v535 = vsel %vm533, %v532, 0
    %537 = vmatpush.msra.mxu0 0.0
    %538 = vmatpush.msra.mxu0 0.0
    %539 = vmatpush.msra.mxu0 0.0
    %540 = vmatpush.msra.mxu0 0.0
    %541 = vmatpush.msra.mxu0 0.0
    %542 = vmatpush.msra.mxu0 0.0
    %543 = vmatpush.msra.mxu0 0.0
    %544 = vmatpush.msra.mxu0 0.0
    %545 = vmatpush.msra.mxu0 %v516
    %546 = vmatpush.msra.mxu0 %v486
    %547 = vmatpush.msra.mxu0 %v456
    %548 = vmatpush.msra.mxu0 %v426
    %549 = vmatpush.msra.mxu0 %v396
    %550 = vmatpush.msra.mxu0 %v366
    %551 = vmatpush.msra.mxu0 %v336
    %552 = vmatpush.msra.mxu0 %v306
    %553 = vmatmul.f32.gmra.mxu0 %v535
    %v554 = vpop.f32.mrf.mxu0
    %v555 = vadd.f32 0.0, %v554
    %556 = vdwg.mxu0
    %557 = vmatpush.msra.mxu0 0.0
    %558 = vmatpush.msra.mxu0 0.0
    %559 = vmatpush.msra.mxu0 0.0
    %560 = vmatpush.msra.mxu0 0.0
    %561 = vmatpush.msra.mxu0 0.0
    %562 = vmatpush.msra.mxu0 0.0
    %563 = vmatpush.msra.mxu0 0.0
    %564 = vmatpush.msra.mxu0 0.0
    %565 = vmatpush.msra.mxu0 %v531
    %566 = vmatpush.msra.mxu0 %v501
    %567 = vmatpush.msra.mxu0 %v471
    %568 = vmatpush.msra.mxu0 %v441
    %569 = vmatpush.msra.mxu0 %v411
    %570 = vmatpush.msra.mxu0 %v381
    %571 = vmatpush.msra.mxu0 %v351
    %572 = vmatpush.msra.mxu0 %v321
    %573 = vmatmul.f32.gmra.mxu0 %v535
    %v574 = vpop.f32.mrf.mxu0
    %v575 = vadd.f32 0.0, %v574
    %576 = vdwg.mxu0
    %578 = vrot.lane.b32.xlu0 %v575, 16
    %v579 = vpop.permute.xlu0 %578
    %582 = vrot.lane.b32.xlu0 %v555, 16
    %v583 = vpop.permute.xlu0 %582
    %v584 = vsel %vm38, %v583, %v579
    %v587 = vsel %vm38, %v579, %v583
    %v588 = vsel %vm45, 0.0, %v587
    %v589 = vsel %vm46, 0.0, %v584
    %v590 = vrot.slane %v555, 2
    %v591 = vrot.slane %v575, 2
    %v594 = vadd.f32 %v588, %v590
    %v595 = vadd.f32 %v589, %v591
    %596 = vrot.lane.b32.xlu0 %v555, 112
    %v597 = vpop.permute.xlu0 %596
    %598 = vrot.lane.b32.xlu0 %v575, 112
    %v599 = vpop.permute.xlu0 %598
    %v600 = vsel %vm53, %v597, %v599
    %v604 = vsel %vm53, %v599, %v597
    %v605 = vsel %vm61, 0.0, %v600
    %v606 = vsel %vm62, 0.0, %v604
    %v609 = vrot.slane %v605, 4
    %v610 = vrot.slane %v606, 4
    %v613 = vadd.f32 %v594, %v609
    %v614 = vadd.f32 %v595, %v610
    %s615 = sld [smem:[#allocation2]]
    %v616 = vstv %s615
    %v617 = vadd.f32 %v613, %v616
    %v618 = vadd.f32 %v614, %v616
    %v619 = vsub.f32 0.0, %v617
    %v620 = vsub.f32 0.0, %v618
    %v621 = vmul.f32 %v619, 1.442695
    %v622 = vpow.pop %v621
    %v623 = vmul.f32 %v620, 1.442695
    %v624 = vpow.pop %v623
    %v625 = vadd.f32 %v622, 1.0
    %v626 = vadd.f32 %v624, 1.0
    %v627 = vrcp.pop %v625
    %v628 = vmul.f32 %v625, %v627
    %v629 = vsub.f32 1.0, %v628
    %v630 = vmul.f32 %v627, %v629
    %v631 = vadd.f32 %v627, %v630
    %vm632 = vweird.f32 %v625
    %vm633 = vweird.f32 %v627
    %vm634 = vmor %vm632, %vm633
    %v635 = vsel %vm634, %v627, %v631
    %v636 = vand.u32 2147483647, %v625
    %vm637 = vcmp.eq.f32.partialorder %v636, 8.507059e+37
    %v638 = vand.u32 %v625, 2147483648
    %v639 = vor.u32 1.1754944e-38, %v638
    %v640 = vsel %vm637, %v639, %v635
    %v641 = vmul.f32 1.0, %v640
    %v642 = vrcp.pop %v626
    %v643 = vmul.f32 %v626, %v642
    %v644 = vsub.f32 1.0, %v643
    %v645 = vmul.f32 %v642, %v644
    %v646 = vadd.f32 %v642, %v645
    %vm647 = vweird.f32 %v626
    %vm648 = vweird.f32 %v642
    %vm649 = vmor %vm647, %vm648
    %v650 = vsel %vm649, %v642, %v646
    %v651 = vand.u32 2147483647, %v626
    %vm652 = vcmp.eq.f32.partialorder %v651, 8.507059e+37
    %v653 = vand.u32 %v626, 2147483648
    %v654 = vor.u32 1.1754944e-38, %v653
    %v655 = vsel %vm652, %v654, %v650
    %v656 = vmul.f32 1.0, %v655
    %v657 = vperm.slane %v641, 0
    %v658 = vperm.slane %v656, 0
    %v659 = vmul.f32 %v22, %v657
    %v660 = vmul.f32 %v23, %v658
    %661 = vst [vmem:[#allocation3] sm:$0xf] %v659
    %662 = vst [vmem:[#allocation3 + $0x8] sm:$0xf] %v660
    %v663 = vperm.slane %v641, 1
    %v664 = vperm.slane %v656, 1
    %v665 = vmul.f32 %v22, %v663
    %v666 = vmul.f32 %v23, %v664
    %667 = vst [vmem:[#allocation3] sm:$0xf0] %v665
    %668 = vst [vmem:[#allocation3 + $0x8] sm:$0xf0] %v666
    // Predicated region
    $region22: #{tpu_custom_call.1} parent=1 // pred_check
      _
    $region23: #{tpu_custom_call.1} parent=1 // pred_check_branch
      %670 = sbr.rel (0) target = $region25
    $region24: #{tpu_custom_call.1} parent=1 // pred_region
      %672 = vsyncadd [#allocation4], 0
      %s674 = sshll.u32 [#allocation3], 4
      %s675 = int_to_ptr.vmem [resolvable:$true] %s674
      %s676 = sshll.u32 %s5, 4
      %s677 = int_to_ptr.hbm [resolvable:$true] %s676
      %679 = dma.vmem_to_hbm [thread:$0]  %s675, 256, %s677, [#allocation4]
    $region25: #{tpu_custom_call.1} parent=1 // pred_fallthru
      _
    // Predicated region
    $region26: #{tpu_custom_call.1} parent=1 // pred_check
      _
    $region27: #{tpu_custom_call.1} parent=1 // pred_check_branch
      %681 = sbr.rel (0) target = $region29
    $region28: #{tpu_custom_call.1} parent=1 // pred_region
      %683 = dma.done [#allocation4], 256
    $region29: #{tpu_custom_call.1} parent=1 // pred_fallthru
      _
    %684 = vsyncpa [#allocation4], 1

</llo_original>
